<compile_context>
chip_gen: v7x
topology: tpu7x:2x2x1
jax: 0.10.0
libtpu: 0.0.40
codegen_flags: <defaults>
</compile_context>

<pallas_src>
from functools import partial

import jax
import jax.numpy as jnp
from jax.experimental import pallas as pl
from jax.experimental.pallas import tpu as pltpu


def _round_up(a: int, b: int) -> int:
    return (a + b - 1) // b * b


# ---------------------------------------------------------------------------
# Kernels
# ---------------------------------------------------------------------------

def _sage_kernel_resident(adj_ref, x_ref, w_agg_ref, w_self_ref, b_ref,
                          o_ref, acc_ref, *, ones_col):
    """x_aug fully resident in VMEM; sliced per grid step."""
    i = pl.program_id(0)
    k = pl.program_id(1)
    tm, tk = adj_ref.shape

    @pl.when(k == 0)
    def _init():
        acc_ref[...] = jnp.zeros_like(acc_ref)

    # bf16 x bf16 MXU matmul, f32 accumulation. The ones column of x makes the
    # in-degree ride along the same matmul (column `ones_col` of the acc).
    xn = x_ref[pl.ds(pl.multiple_of(k * tk, tk), tk), :]
    acc_ref[...] += jnp.dot(adj_ref[...], xn,
                            preferred_element_type=jnp.float32)

    @pl.when(k == pl.num_programs(1) - 1)
    def _epilogue():
        acc = acc_ref[...]                                  # [tm, c_pad] f32
        deg = acc[:, ones_col:ones_col + 1]                 # static lane slice
        inv = jnp.where(deg == 0.0, 0.0, pl.reciprocal(deg, approx=True))
        mean = acc * inv
        xs = x_ref[pl.ds(pl.multiple_of(i * tm, tm), tm), :].astype(jnp.float32)
        # cat([mean, x], -1) @ W.T + b == mean @ W1 + x @ W2 + b
        # (padded rows of W1/W2 are zero, so ones/pad columns contribute 0)
        out = jnp.dot(mean, w_agg_ref[...], preferred_element_type=jnp.float32)
        out = out + jnp.dot(xs, w_self_ref[...],
                            preferred_element_type=jnp.float32)
        out = out + b_ref[...]
        o_ref[...] = out.astype(o_ref.dtype)


def _sage_kernel_streamed(adj_ref, xn_ref, xs_ref, w_agg_ref, w_self_ref,
                          b_ref, o_ref, acc_ref, *, ones_col):
    """Fallback: neighbor/self feature tiles streamed via BlockSpec."""
    k = pl.program_id(1)

    @pl.when(k == 0)
    def _init():
        acc_ref[...] = jnp.zeros_like(acc_ref)

    acc_ref[...] += jnp.dot(adj_ref[...], xn_ref[...],
                            preferred_element_type=jnp.float32)

    @pl.when(k == pl.num_programs(1) - 1)
    def _epilogue():
        acc = acc_ref[...]
        deg = acc[:, ones_col:ones_col + 1]
        inv = jnp.where(deg == 0.0, 0.0, pl.reciprocal(deg, approx=True))
        mean = acc * inv
        xs = xs_ref[...].astype(jnp.float32)
        out = jnp.dot(mean, w_agg_ref[...], preferred_element_type=jnp.float32)
        out = out + jnp.dot(xs, w_self_ref[...],
                            preferred_element_type=jnp.float32)
        out = out + b_ref[...]
        o_ref[...] = out.astype(o_ref.dtype)


# ---------------------------------------------------------------------------
# Wrapper
# ---------------------------------------------------------------------------

def _emma_sage_impl(adj, x, weight, bias, *, tm=512, tk=1024,
                    force_stream=False):
    """adj: [N, N] (0/1), x: [N, C], weight: [O, 2C] (torch layout), bias: [O]."""
    N, C = x.shape
    O = weight.shape[0]
    assert adj.shape == (N, N)
    assert weight.shape == (O, 2 * C)

    lane = 128
    n128 = _round_up(N, lane)

    # Clamp tiles to the problem size; keep tm | tk so one padded x buffer
    # serves both the neighbor and the self slices.
    tm = min(tm, n128)
    tk = min(max(tk, tm), n128)
    if tk % tm != 0:
        tk = _round_up(tk, tm)

    # Decoupled row/column padding for the adjacency.
    n_row_pad = _round_up(N, tm)
    n_col_pad = _round_up(N, tk)
    n_x_pad = n_col_pad                 # >= n_row_pad and divisible by tm, tk

    c_pad = _round_up(C + 1, lane)      # +1 lane for the ones/degree column
    o_pad = _round_up(O, lane)          # lane-dense output stores

    # bf16 adjacency (exact for 0/1 edges), zero-padded, decoupled row/col pad.
    adj_p = jnp.zeros((n_row_pad, n_col_pad), jnp.bfloat16)
    adj_p = adj_p.at[:N, :N].set(adj.astype(jnp.bfloat16))

    # bf16 features with a ones column at lane index C (degree trick).
    x_aug = jnp.zeros((n_x_pad, c_pad), jnp.bfloat16)
    x_aug = x_aug.at[:N, :C].set(x.astype(jnp.bfloat16))
    x_aug = x_aug.at[:, C].set(jnp.bfloat16(1.0))

    # Split torch Linear weight into aggregated/self halves, [C,O], f32, padded.
    w_agg = jnp.zeros((c_pad, o_pad), jnp.float32).at[:C, :O].set(
        weight[:, :C].T.astype(jnp.float32))
    w_self = jnp.zeros((c_pad, o_pad), jnp.float32).at[:C, :O].set(
        weight[:, C:].T.astype(jnp.float32))
    b_pad = jnp.zeros((1, o_pad), jnp.float32).at[0, :O].set(
        bias.astype(jnp.float32))

    grid = (n_row_pad // tm, n_col_pad // tk)

    # --- VMEM plan ---------------------------------------------------------
    itemsize_out = jnp.dtype(x.dtype).itemsize
    bytes_adj_tiles = 2 * tm * tk * 2                       # double-buffered bf16
    bytes_out_tiles = 2 * tm * o_pad * itemsize_out
    bytes_weights = 2 * (2 * c_pad * o_pad * 4) + 2 * o_pad * 4
    bytes_acc = tm * c_pad * 4
    bytes_x_resident = n_x_pad * c_pad * 2
    bytes_x_streamed = 2 * (tk * c_pad * 2) + 2 * (tm * c_pad * 2)

    est_resident = (bytes_adj_tiles + bytes_out_tiles + bytes_weights
                    + bytes_acc + bytes_x_resident)
    est_streamed = (bytes_adj_tiles + bytes_out_tiles + bytes_weights
                    + bytes_acc + bytes_x_streamed)

    RESIDENT_BUDGET = 44 * 1024 * 1024   # conservative vs. v7x's 64 MiB / TC
    use_resident = (not force_stream) and (est_resident <= RESIDENT_BUDGET)
    vmem_est = est_resident if use_resident else est_streamed
    vmem_limit = int(min(max(vmem_est + (4 << 20), 32 << 20), 48 << 20))

    # --- specs & operands ----------------------------------------------------
    if use_resident:
        kernel = partial(_sage_kernel_resident, ones_col=C)
        in_specs = [
            pl.BlockSpec((tm, tk), lambda i, k: (i, k)),          # adj tile
            pl.BlockSpec((n_x_pad, c_pad), lambda i, k: (0, 0)),  # resident x
            pl.BlockSpec((c_pad, o_pad), lambda i, k: (0, 0)),    # W_agg
            pl.BlockSpec((c_pad, o_pad), lambda i, k: (0, 0)),    # W_self
            pl.BlockSpec((1, o_pad), lambda i, k: (0, 0)),        # bias
        ]
        operands = (adj_p, x_aug, w_agg, w_self, b_pad)
    else:
        kernel = partial(_sage_kernel_streamed, ones_col=C)
        in_specs = [
            pl.BlockSpec((tm, tk), lambda i, k: (i, k)),          # adj tile
            pl.BlockSpec((tk, c_pad), lambda i, k: (k, 0)),       # neighbor feats
            pl.BlockSpec((tm, c_pad), lambda i, k: (i, 0)),       # self feats
            pl.BlockSpec((c_pad, o_pad), lambda i, k: (0, 0)),    # W_agg
            pl.BlockSpec((c_pad, o_pad), lambda i, k: (0, 0)),    # W_self
            pl.BlockSpec((1, o_pad), lambda i, k: (0, 0)),        # bias
        ]
        operands = (adj_p, x_aug, x_aug, w_agg, w_self, b_pad)

    out = pl.pallas_call(
        kernel,
        out_shape=jax.ShapeDtypeStruct((n_row_pad, o_pad), x.dtype),
        grid_spec=pltpu.PrefetchScalarGridSpec(
            num_scalar_prefetch=0,
            grid=grid,
            in_specs=in_specs,
            out_specs=pl.BlockSpec((tm, o_pad), lambda i, k: (i, 0)),
            scratch_shapes=[pltpu.VMEM((tm, c_pad), jnp.float32)],
        ),
        compiler_params=pltpu.CompilerParams(
            dimension_semantics=("parallel", "arbitrary"),
            vmem_limit_bytes=vmem_limit,
        ),
    )(*operands)

    return out[:N, :O]


# Jit so the per-call pad/cast preprocessing fuses with the pallas_call.
emma_sage_layer = jax.jit(_emma_sage_impl,
                          static_argnames=("tm", "tk", "force_stream"))


def _reference(adj, x, weight, bias):
    agg = adj @ x
    deg = adj.sum(axis=1, keepdims=True)
    inv = jnp.where(deg == 0.0, 0.0, 1.0 / deg)
    mean = agg * inv
    h = jnp.concatenate([mean, x], axis=-1)
    return h @ weight.T + bias


if __name__ == "__main__":
    # Small shapes: N nodes, in_channels C, out_channels O.
    # N deliberately not a multiple of the tiles to exercise padding.
    N, C, O = 500, 32, 48

    key = jax.random.PRNGKey(0)
    k_adj, k_x, k_w, k_b = jax.random.split(key, 4)

    # Random sparse-ish binary adjacency, with a forced zero-degree node.
    adj = (jax.random.uniform(k_adj, (N, N)) < 0.05).astype(jnp.float32)
    adj = adj.at[0, :].set(0.0)

    x = jax.random.normal(k_x, (N, C), dtype=jnp.float32)

    # Deterministic nn.Linear(2C -> O) init (uniform(-bound, bound)).
    bound = 1.0 / jnp.sqrt(2.0 * C)
    weight = jax.random.uniform(k_w, (O, 2 * C), minval=-bound, maxval=bound,
                                dtype=jnp.float32)
    bias = jax.random.uniform(k_b, (O,), minval=-bound, maxval=bound,
                              dtype=jnp.float32)

    ref = _reference(adj, x, weight, bias)

    # Small tiles so the demo exercises a multi-step (i, k) grid: grid = (4, 2).
    # This hits the resident-x fast path.
    out = emma_sage_layer(adj, x, weight, bias, tm=128, tk=256)
    out = jax.block_until_ready(out)
    assert out.shape == (N, O)
    assert jnp.allclose(out, ref, atol=1e-2, rtol=1e-2), \
        "resident path mismatch vs reference"

    # Streamed fallback path (used when features don't fit VMEM residency).
    out_s = emma_sage_layer(adj, x, weight, bias, tm=128, tk=256,
                            force_stream=True)
    out_s = jax.block_until_ready(out_s)
    assert jnp.allclose(out_s, ref, atol=1e-2, rtol=1e-2), \
        "streamed path mismatch vs reference"

    print("KERNEL_OK")
</pallas_src>

<mosaic_0001>
module attributes {stable_mosaic.version = 11 : i64} {
  func.func @_sage_kernel_resident(%arg0: i32, %arg1: i32, %arg2: memref<128x256xbf16, #tpu.memory_space<vmem>>, %arg3: memref<512x128xbf16, #tpu.memory_space<vmem>>, %arg4: memref<128x128xf32, #tpu.memory_space<vmem>>, %arg5: memref<128x128xf32, #tpu.memory_space<vmem>>, %arg6: memref<1x128xf32, #tpu.memory_space<vmem>>, %arg7: memref<128x128xf32, #tpu.memory_space<vmem>>, %arg8: memref<128x128xf32, #tpu.memory_space<vmem>>) attributes {dimension_semantics = [#tpu.dimension_semantics<parallel>, #tpu.dimension_semantics<arbitrary>], iteration_bounds = array<i64: 4, 2>, scalar_prefetch = 0 : i64, scratch_operands = 1 : i64, tpu.core_type = #tpu.core_type<tc>, window_params = [{transform_indices = @transform_0, window_bounds = array<i64: 128, 256>}, {pipeline_mode = #tpu.pipeline_mode<synchronous>, transform_indices = @transform_1, window_bounds = array<i64: 512, 128>}, {pipeline_mode = #tpu.pipeline_mode<synchronous>, transform_indices = @transform_2, window_bounds = array<i64: 128, 128>}, {pipeline_mode = #tpu.pipeline_mode<synchronous>, transform_indices = @transform_3, window_bounds = array<i64: 128, 128>}, {pipeline_mode = #tpu.pipeline_mode<synchronous>, transform_indices = @transform_4, window_bounds = array<i64: 1, 128>}, {transform_indices = @transform_5, window_bounds = array<i64: 128, 128>}]} {
    %c0_i32 = arith.constant 0 : i32
    %0 = arith.cmpi eq, %arg1, %c0_i32 : i32
    %1 = arith.extui %0 : i1 to i32
    %c0_i32_0 = arith.constant 0 : i32
    %2 = arith.cmpi ne, %1, %c0_i32_0 : i32
    scf.if %2 {
      %cst_8 = arith.constant 0.000000e+00 : f32
      %15 = vector.broadcast %cst_8 : f32 to vector<128x128xf32>
      %c0_9 = arith.constant 0 : index
      %c0_10 = arith.constant 0 : index
      %16 = vector.load %arg8[%c0_9, %c0_10] : memref<128x128xf32, #tpu.memory_space<vmem>>, vector<128x128xf32>
      tpu.vector_store %arg8[%c0_9, %c0_10], %15 {strides = array<i32>} : memref<128x128xf32, #tpu.memory_space<vmem>>, vector<128x128xf32>,
    } else {
    }
    %c256_i32 = arith.constant 256 : i32
    %3 = arith.muli %arg1, %c256_i32 : i32
    %4 = tpu.assume_multiple %3, 256 : i32
    %5 = arith.index_cast %4 : i32 to index
    %c0 = arith.constant 0 : index
    %6 = vector.load %arg3[%5, %c0] : memref<512x128xbf16, #tpu.memory_space<vmem>>, vector<256x128xbf16>
    %c0_1 = arith.constant 0 : index
    %c0_2 = arith.constant 0 : index
    %7 = vector.load %arg8[%c0_1, %c0_2] : memref<128x128xf32, #tpu.memory_space<vmem>>, vector<128x128xf32>
    %c0_3 = arith.constant 0 : index
    %c0_4 = arith.constant 0 : index
    %8 = vector.load %arg2[%c0_3, %c0_4] : memref<128x256xbf16, #tpu.memory_space<vmem>>, vector<128x256xbf16>
    %cst = arith.constant dense<0.000000e+00> : vector<128x128xf32>
    %9 = tpu.matmul %8, %6, %cst {dimension_numbers = #tpu.dot_dimension_numbers<[1], [0], [0], [1], [0, 0, 1, 1], [], []>} : vector<128x256xbf16>, vector<256x128xbf16>, vector<128x128xf32> -> vector<128x128xf32>
    %10 = arith.addf %7, %9 : vector<128x128xf32>
    %c0_5 = arith.constant 0 : index
    %c0_6 = arith.constant 0 : index
    %11 = vector.load %arg8[%c0_5, %c0_6] : memref<128x128xf32, #tpu.memory_space<vmem>>, vector<128x128xf32>
    tpu.vector_store %arg8[%c0_5, %c0_6], %10 {strides = array<i32>} : memref<128x128xf32, #tpu.memory_space<vmem>>, vector<128x128xf32>,
    %c1_i32 = arith.constant 1 : i32
    %12 = arith.cmpi eq, %arg1, %c1_i32 : i32
    %13 = arith.extui %12 : i1 to i32
    %c0_i32_7 = arith.constant 0 : i32
    %14 = arith.cmpi ne, %13, %c0_i32_7 : i32
    scf.if %14 {
      %c0_8 = arith.constant 0 : index
      %c0_9 = arith.constant 0 : index
      %15 = vector.load %arg8[%c0_8, %c0_9] : memref<128x128xf32, #tpu.memory_space<vmem>>, vector<128x128xf32>
      %16 = vector.extract_strided_slice %15 {offsets = [0, 32], sizes = [128, 1], strides = [1, 1]} : vector<128x128xf32> to vector<128x1xf32>
      %cst_10 = arith.constant 0.000000e+00 : f32
      %17 = vector.broadcast %cst_10 : f32 to vector<128x1xf32>
      %18 = arith.cmpf oeq, %16, %17 : vector<128x1xf32>
      %19 = tpu.reciprocal %16 {approx = true} : vector<128x1xf32> -> vector<128x1xf32>
      %cst_11 = arith.constant 0.000000e+00 : f32
      %20 = vector.broadcast %cst_11 : f32 to vector<128x1xf32>
      %21 = arith.select %18, %20, %19 : vector<128x1xi1>, vector<128x1xf32>
      %22 = vector.broadcast %21 : vector<128x1xf32> to vector<128x128xf32>
      %23 = arith.mulf %15, %22 : vector<128x128xf32>
      %c128_i32 = arith.constant 128 : i32
      %24 = arith.muli %arg0, %c128_i32 : i32
      %25 = tpu.assume_multiple %24, 128 : i32
      %26 = arith.index_cast %25 : i32 to index
      %c0_12 = arith.constant 0 : index
      %27 = vector.load %arg3[%26, %c0_12] : memref<512x128xbf16, #tpu.memory_space<vmem>>, vector<128x128xbf16>
      %28 = arith.extf %27 : vector<128x128xbf16> to vector<128x128xf32>
      %c0_13 = arith.constant 0 : index
      %c0_14 = arith.constant 0 : index
      %29 = vector.load %arg4[%c0_13, %c0_14] : memref<128x128xf32, #tpu.memory_space<vmem>>, vector<128x128xf32>
      %cst_15 = arith.constant dense<0.000000e+00> : vector<128x128xf32>
      %30 = tpu.matmul %23, %29, %cst_15 {dimension_numbers = #tpu.dot_dimension_numbers<[1], [0], [0], [1], [0, 0, 1, 1], [], []>} : vector<128x128xf32>, vector<128x128xf32>, vector<128x128xf32> -> vector<128x128xf32>
      %c0_16 = arith.constant 0 : index
      %c0_17 = arith.constant 0 : index
      %31 = vector.load %arg5[%c0_16, %c0_17] : memref<128x128xf32, #tpu.memory_space<vmem>>, vector<128x128xf32>
      %cst_18 = arith.constant dense<0.000000e+00> : vector<128x128xf32>
      %32 = tpu.matmul %28, %31, %cst_18 {dimension_numbers = #tpu.dot_dimension_numbers<[1], [0], [0], [1], [0, 0, 1, 1], [], []>} : vector<128x128xf32>, vector<128x128xf32>, vector<128x128xf32> -> vector<128x128xf32>
      %33 = arith.addf %30, %32 : vector<128x128xf32>
      %c0_19 = arith.constant 0 : index
      %c0_20 = arith.constant 0 : index
      %34 = vector.load %arg6[%c0_19, %c0_20] : memref<1x128xf32, #tpu.memory_space<vmem>>, vector<1x128xf32>
      %35 = vector.broadcast %34 : vector<1x128xf32> to vector<128x128xf32>
      %36 = arith.addf %33, %35 : vector<128x128xf32>
      %c0_21 = arith.constant 0 : index
      %c0_22 = arith.constant 0 : index
      %37 = vector.load %arg7[%c0_21, %c0_22] : memref<128x128xf32, #tpu.memory_space<vmem>>, vector<128x128xf32>
      tpu.vector_store %arg7[%c0_21, %c0_22], %36 {strides = array<i32>} : memref<128x128xf32, #tpu.memory_space<vmem>>, vector<128x128xf32>,
    } else {
    }
    return
  }
  func.func @transform_0(%arg0: i32, %arg1: i32) -> (i32, i32) {
    %c0_i32 = arith.constant 0 : i32
    return %arg0, %arg1 : i32, i32
  }
  func.func @transform_1(%arg0: i32, %arg1: i32) -> (i32, i32) {
    %c0_i32 = arith.constant 0 : i32
    %c0_i32_0 = arith.constant 0 : i32
    %c0_i32_1 = arith.constant 0 : i32
    return %c0_i32, %c0_i32_0 : i32, i32
  }
  func.func @transform_2(%arg0: i32, %arg1: i32) -> (i32, i32) {
    %c0_i32 = arith.constant 0 : i32
    %c0_i32_0 = arith.constant 0 : i32
    %c0_i32_1 = arith.constant 0 : i32
    return %c0_i32, %c0_i32_0 : i32, i32
  }
  func.func @transform_3(%arg0: i32, %arg1: i32) -> (i32, i32) {
    %c0_i32 = arith.constant 0 : i32
    %c0_i32_0 = arith.constant 0 : i32
    %c0_i32_1 = arith.constant 0 : i32
    return %c0_i32, %c0_i32_0 : i32, i32
  }
  func.func @transform_4(%arg0: i32, %arg1: i32) -> (i32, i32) {
    %c0_i32 = arith.constant 0 : i32
    %c0_i32_0 = arith.constant 0 : i32
    %c0_i32_1 = arith.constant 0 : i32
    return %c0_i32, %c0_i32_0 : i32, i32
  }
  func.func @transform_5(%arg0: i32, %arg1: i32) -> (i32, i32) {
    %c0_i32 = arith.constant 0 : i32
    %c0_i32_0 = arith.constant 0 : i32
    return %arg0, %c0_i32 : i32, i32
  }
}

</mosaic_0001>

<llo_original>
// kernel: _emma_sage_impl.1
$region0: #{_emma_sage_impl.1}
  #allocation0 [shape = 'u32[]', space=smem, size = 0x4, offset = 0x4, fixed_abs, tag = 'smem constant byte address 0x4 - core index']
  #allocation1 [shape = 'u32[144,128]{1,0:T(1,128)}', space=vmem, size = 0x12000, scoped, tag = 'internal scratch']
  #allocation2 [shape = 'f32[128,128]{1,0:T(8,128)}', space=vmem, size = 0x10000, scoped, tag = 'scratch operand']
  %s0 = inlined_call_operand.vmem [shape: bf16[512,512], index: 0, kind: input, shape index: {}]
  %s1 = inlined_call_operand.vmem [shape: bf16[512,128], index: 1, kind: input, shape index: {}]
  %s2 = inlined_call_operand.vmem [shape: f32[128,128], index: 2, kind: input, shape index: {}]
  %s3 = inlined_call_operand.vmem [shape: f32[128,128], index: 3, kind: input, shape index: {}]
  %s4 = inlined_call_operand.vmem [shape: f32[1,128], index: 4, kind: input, shape index: {}]
  %s5 = inlined_call_operand.vmem [shape: f32[512,128], index: 5, kind: output, shape index: {}]
  %s6 = sld [smem:[#allocation0]]
  $region99: #{_emma_sage_impl.1} parent=0
    _
  %s8 = ssub.s32 1, %s6
  %s9 = scalar_select 0, %s8, %s6
  $region1: #{_emma_sage_impl.1} parent=0
    #allocation3 [shape = 'u8[131072]{0}', space=vmem, size = 0x20000, scoped, tag = 'input window, operand 0']
    loop: start=0, step=1, limit=10
    $region2: #{_emma_sage_impl.1} parent=1 // loop_pre_header
      _
    $region3: #{_emma_sage_impl.1} parent=1 // loop_header
      %s11 = sphi 0, %s15
      %p12 = scmp.ge.s32.totalorder %s11, 10
      %s18 = sphi 0, %s30
      %s19 = sphi 0, %s26
      %s20 = sphi 0, %s18
      %s21 = sphi 0, %s19
      %s22 = sphi 0, %s20
      %s23 = sphi 0, %s21
      %s35 = sphi 0, %s37
      %s38 = sphi 0, %s35
      %s39 = sphi 0, %s38
      %s55 = sphi 0, %s39
      %s59 = sphi 0, %s59
      %s61 = sphi 0, %s59
      %s62 = sphi 0, %s61
      %s76 = sphi 0, %s62
      %s80 = sphi 0, %s80
      %s82 = sphi 0, %s80
      %s83 = sphi 0, %s82
      %s97 = sphi 0, %s83
      %s101 = sphi 0, %s101
      %s103 = sphi 0, %s101
      %s104 = sphi 0, %s103
      %s118 = sphi 0, %s104
      %s122 = sphi 0, %s122
      %s124 = sphi 0, %s122
      %s125 = sphi 0, %s124
      %s139 = sphi 0, %s125
      %s145 = sphi 0, %s147
      %s148 = sphi 0, %s145
      %s149 = sphi 0, %s148
      %s165 = sphi 0, %s149
    $region4: #{_emma_sage_impl.1} parent=1 // loop_header_branch
      %14 = sbr.rel (%p12) target = $region8
    $region5: #{_emma_sage_impl.1} parent=1 // loop_body
      %s16 = ssub.s32 %s11, 1
      %s17 = ssub.s32 %s11, 2
      %s24 = sadd.s32 1, %s19
      %p25 = scmp.ge.s32.totalorder %s24, 2
      %s26 = scalar_select %p25, 0, %s24
      %s27 = sadd.s32 1, %s18
      %s28 = scalar_select %p25, %s27, %s18
      %p29 = scmp.ge.s32.totalorder %s28, 4
      %s30 = scalar_select %p29, 0, %s28
      %s31 = ssub.s32 %s18, %s30
      %s32 = ssub.s32 %s19, %s26
      %s33 = sor.u32 %s31, %s32
      %p34 = scmp.eq.s32.totalorder %s33, 0
      %s36 = sadd.s32 %s35, 1
      %s37 = scalar_select %p34, %s35, %s36
      %p40 = pneg %p34
      %p41 = scmp.eq.s32.totalorder %s11, 7
      %p42 = por %p40, %p41
      %p43 = scmp.ne.s32.totalorder %s35, %s38
      %p44 = scmp.eq.s32.totalorder %s11, 0
      %p45 = por %p43, %p44
      %p46 = scmp.ne.s32.totalorder %s35, %s38
      %p47 = scmp.eq.s32.totalorder %s16, 7
      %p48 = por %p46, %p47
      %p49 = scmp.ne.s32.totalorder %s38, %s39
      %p50 = scmp.eq.s32.totalorder %s16, 0
      %p51 = por %p49, %p50
      %p52 = scmp.ne.s32.totalorder %s38, %s39
      %p53 = scmp.eq.s32.totalorder %s17, 7
      %p54 = por %p52, %p53
      %p56 = scmp.ne.s32.totalorder %s39, %s55
      %p57 = scmp.eq.s32.totalorder %s17, 0
      %p58 = por %p56, %p57
      %s60 = sadd.s32 %s59, 1
      %p63 = scmp.eq.s32.totalorder %s11, 7
      %p64 = scmp.ne.s32.totalorder %s59, %s61
      %p65 = scmp.eq.s32.totalorder %s11, 0
      %p66 = por %p64, %p65
      %p67 = scmp.ne.s32.totalorder %s59, %s61
      %p68 = scmp.eq.s32.totalorder %s16, 7
      %p69 = por %p67, %p68
      %p70 = scmp.ne.s32.totalorder %s61, %s62
      %p71 = scmp.eq.s32.totalorder %s16, 0
      %p72 = por %p70, %p71
      %p73 = scmp.ne.s32.totalorder %s61, %s62
      %p74 = scmp.eq.s32.totalorder %s17, 7
      %p75 = por %p73, %p74
      %p77 = scmp.ne.s32.totalorder %s62, %s76
      %p78 = scmp.eq.s32.totalorder %s17, 0
      %p79 = por %p77, %p78
      %s81 = sadd.s32 %s80, 1
      %p84 = scmp.eq.s32.totalorder %s11, 7
      %p85 = scmp.ne.s32.totalorder %s80, %s82
      %p86 = scmp.eq.s32.totalorder %s11, 0
      %p87 = por %p85, %p86
      %p88 = scmp.ne.s32.totalorder %s80, %s82
      %p89 = scmp.eq.s32.totalorder %s16, 7
      %p90 = por %p88, %p89
      %p91 = scmp.ne.s32.totalorder %s82, %s83
      %p92 = scmp.eq.s32.totalorder %s16, 0
      %p93 = por %p91, %p92
      %p94 = scmp.ne.s32.totalorder %s82, %s83
      %p95 = scmp.eq.s32.totalorder %s17, 7
      %p96 = por %p94, %p95
      %p98 = scmp.ne.s32.totalorder %s83, %s97
      %p99 = scmp.eq.s32.totalorder %s17, 0
      %p100 = por %p98, %p99
      %s102 = sadd.s32 %s101, 1
      %p105 = scmp.eq.s32.totalorder %s11, 7
      %p106 = scmp.ne.s32.totalorder %s101, %s103
      %p107 = scmp.eq.s32.totalorder %s11, 0
      %p108 = por %p106, %p107
      %p109 = scmp.ne.s32.totalorder %s101, %s103
      %p110 = scmp.eq.s32.totalorder %s16, 7
      %p111 = por %p109, %p110
      %p112 = scmp.ne.s32.totalorder %s103, %s104
      %p113 = scmp.eq.s32.totalorder %s16, 0
      %p114 = por %p112, %p113
      %p115 = scmp.ne.s32.totalorder %s103, %s104
      %p116 = scmp.eq.s32.totalorder %s17, 7
      %p117 = por %p115, %p116
      %p119 = scmp.ne.s32.totalorder %s104, %s118
      %p120 = scmp.eq.s32.totalorder %s17, 0
      %p121 = por %p119, %p120
      %s123 = sadd.s32 %s122, 1
      %p126 = scmp.eq.s32.totalorder %s11, 7
      %p127 = scmp.ne.s32.totalorder %s122, %s124
      %p128 = scmp.eq.s32.totalorder %s11, 0
      %p129 = por %p127, %p128
      %p130 = scmp.ne.s32.totalorder %s122, %s124
      %p131 = scmp.eq.s32.totalorder %s16, 7
      %p132 = por %p130, %p131
      %p133 = scmp.ne.s32.totalorder %s124, %s125
      %p134 = scmp.eq.s32.totalorder %s16, 0
      %p135 = por %p133, %p134
      %p136 = scmp.ne.s32.totalorder %s124, %s125
      %p137 = scmp.eq.s32.totalorder %s17, 7
      %p138 = por %p136, %p137
      %p140 = scmp.ne.s32.totalorder %s125, %s139
      %p141 = scmp.eq.s32.totalorder %s17, 0
      %p142 = por %p140, %p141
      %s143 = ssub.s32 %s18, %s30
      %p144 = scmp.eq.s32.totalorder %s143, 0
      %s146 = sadd.s32 %s145, 1
      %s147 = scalar_select %p144, %s145, %s146
      %p150 = pneg %p144
      %p151 = scmp.eq.s32.totalorder %s11, 7
      %p152 = por %p150, %p151
      %p153 = scmp.ne.s32.totalorder %s145, %s148
      %p154 = scmp.eq.s32.totalorder %s11, 0
      %p155 = por %p153, %p154
      %p156 = scmp.ne.s32.totalorder %s145, %s148
      %p157 = scmp.eq.s32.totalorder %s16, 7
      %p158 = por %p156, %p157
      %p159 = scmp.ne.s32.totalorder %s148, %s149
      %p160 = scmp.eq.s32.totalorder %s16, 0
      %p161 = por %p159, %p160
      %p162 = scmp.ne.s32.totalorder %s148, %s149
      %p163 = scmp.eq.s32.totalorder %s17, 7
      %p164 = por %p162, %p163
      %p166 = scmp.ne.s32.totalorder %s149, %s165
      %p167 = scmp.eq.s32.totalorder %s17, 0
      %p168 = por %p166, %p167
      %p169 = scmp.le.s32.totalorder 1, %s11
      %p170 = scmp.lt.s32.totalorder %s11, 9
      %p171 = pnand %p169, %p170
      %p172 = pneg %p171
      // Predicated region
      $region9: #{_emma_sage_impl.1} parent=5 // pred_check
        _
      $region10: #{_emma_sage_impl.1} parent=5 // pred_check_branch
        %174 = sbr.rel (%p171) target = $region12
      $region11: #{_emma_sage_impl.1} parent=5 // pred_region
        %s175 = ssub.s32 %s11, 1
        // Predicated region
        $region13: #{_emma_sage_impl.1} parent=11 // pred_check
          %p176 = pneg %p72
        $region14: #{_emma_sage_impl.1} parent=11 // pred_check_branch
          %178 = sbr.rel (%p176) target = $region16
        $region15: #{_emma_sage_impl.1} parent=11 // pred_region
          _
        $region16: #{_emma_sage_impl.1} parent=11 // pred_fallthru
          _
        // Predicated region
        $region17: #{_emma_sage_impl.1} parent=11 // pred_check
          %p179 = pneg %p93
        $region18: #{_emma_sage_impl.1} parent=11 // pred_check_branch
          %181 = sbr.rel (%p179) target = $region20
        $region19: #{_emma_sage_impl.1} parent=11 // pred_region
          _
        $region20: #{_emma_sage_impl.1} parent=11 // pred_fallthru
          _
        // Predicated region
        $region21: #{_emma_sage_impl.1} parent=11 // pred_check
          %p182 = pneg %p114
        $region22: #{_emma_sage_impl.1} parent=11 // pred_check_branch
          %184 = sbr.rel (%p182) target = $region24
        $region23: #{_emma_sage_impl.1} parent=11 // pred_region
          _
        $region24: #{_emma_sage_impl.1} parent=11 // pred_fallthru
          _
        // Predicated region
        $region25: #{_emma_sage_impl.1} parent=11 // pred_check
          %p185 = pneg %p135
        $region26: #{_emma_sage_impl.1} parent=11 // pred_check_branch
          %187 = sbr.rel (%p185) target = $region28
        $region27: #{_emma_sage_impl.1} parent=11 // pred_region
          _
        $region28: #{_emma_sage_impl.1} parent=11 // pred_fallthru
          _
      $region12: #{_emma_sage_impl.1} parent=5 // pred_fallthru
        _
      %p188 = scmp.lt.s32.totalorder %s11, 8
      // Predicated region
      $region29: #{_emma_sage_impl.1} parent=5 // pred_check
        %p189 = pneg %p188
      $region30: #{_emma_sage_impl.1} parent=5 // pred_check_branch
        %191 = sbr.rel (%p189) target = $region32
      $region31: #{_emma_sage_impl.1} parent=5 // pred_region
        // Predicated region
        $region33: #{_emma_sage_impl.1} parent=31 // pred_check
          %p192 = pneg %p45
        $region34: #{_emma_sage_impl.1} parent=31 // pred_check_branch
          %194 = sbr.rel (%p192) target = $region36
        $region35: #{_emma_sage_impl.1} parent=31 // pred_region
          %s195 = sand.u32 %s35, 1
          %s196 = sand.u32 %s35, 1
          %s197 = smul.addr %s196, 128
          %s198 = scalar_lea.vmem [#allocation3], %s197
          %s199 = smul.u32 16, %s18
          %s200 = smul.u32 2, %s19
          %s201 = smul.addr %s199, 4
          %s202 = sadd.s32 %s200, %s201
          %s203 = smul.addr %s202, 4
          %s204 = scalar_lea.vmem %s0, %s203
          // Predicated region
          $region37: #{_emma_sage_impl.1} parent=35 // pred_check
            _
          $region38: #{_emma_sage_impl.1} parent=35 // pred_check_branch
            %206 = sbr.rel (0) target = $region40
          $region39: #{_emma_sage_impl.1} parent=35 // pred_region
            // Predicated region
            $region41: #{_emma_sage_impl.1} parent=39 // pred_check
              _
            $region42: #{_emma_sage_impl.1} parent=39 // pred_check_branch
              %208 = sbr.rel (0) target = $region44
            $region43: #{_emma_sage_impl.1} parent=39 // pred_region
              // Predicated region
              $region56: #{_emma_sage_impl.1} parent=43 // pred_check
                _
              $region57: #{_emma_sage_impl.1} parent=43 // pred_check_branch
                %253 = sbr.rel (0) target = $region59
              $region58: #{_emma_sage_impl.1} parent=43 // pred_region
                loop: start=0, step=1, limit=1
                $region60: #{_emma_sage_impl.1} parent=58 // loop_pre_header
                  _
                $region61: #{_emma_sage_impl.1} parent=58 // loop_header
                  %s255 = sphi 0, %s259
                  %p256 = scmp.ge.s32.totalorder %s255, 1
                  %s260 = sphi %s204, %s204
                  %s261 = sphi %s198, %s198
                $region62: #{_emma_sage_impl.1} parent=58 // loop_header_branch
                  %258 = sbr.rel (%p256) target = $region66
                $region63: #{_emma_sage_impl.1} parent=58 // loop_body
                  %v262 = vld [vmem:[%s260] sm:$0xff]
                  %263 = vst [vmem:[%s261] sm:$0xff] %v262
                  %v264 = vld [vmem:[%s260 + $0x10] sm:$0xff]
                  %265 = vst [vmem:[%s261 + $0x8] sm:$0xff] %v264
                  %v266 = vld [vmem:[%s260 + $0x20] sm:$0xff]
                  %267 = vst [vmem:[%s261 + $0x10] sm:$0xff] %v266
                  %v268 = vld [vmem:[%s260 + $0x30] sm:$0xff]
                  %269 = vst [vmem:[%s261 + $0x18] sm:$0xff] %v268
                  %v270 = vld [vmem:[%s260 + $0x40] sm:$0xff]
                  %271 = vst [vmem:[%s261 + $0x20] sm:$0xff] %v270
                  %v272 = vld [vmem:[%s260 + $0x50] sm:$0xff]
                  %273 = vst [vmem:[%s261 + $0x28] sm:$0xff] %v272
                  %v274 = vld [vmem:[%s260 + $0x60] sm:$0xff]
                  %275 = vst [vmem:[%s261 + $0x30] sm:$0xff] %v274
                  %v276 = vld [vmem:[%s260 + $0x70] sm:$0xff]
                  %277 = vst [vmem:[%s261 + $0x38] sm:$0xff] %v276
                  %v278 = vld [vmem:[%s260 + $0x80] sm:$0xff]
                  %279 = vst [vmem:[%s261 + $0x40] sm:$0xff] %v278
                  %v280 = vld [vmem:[%s260 + $0x90] sm:$0xff]
                  %281 = vst [vmem:[%s261 + $0x48] sm:$0xff] %v280
                  %v282 = vld [vmem:[%s260 + $0xa0] sm:$0xff]
                  %283 = vst [vmem:[%s261 + $0x50] sm:$0xff] %v282
                  %v284 = vld [vmem:[%s260 + $0xb0] sm:$0xff]
                  %285 = vst [vmem:[%s261 + $0x58] sm:$0xff] %v284
                  %v286 = vld [vmem:[%s260 + $0xc0] sm:$0xff]
                  %287 = vst [vmem:[%s261 + $0x60] sm:$0xff] %v286
                  %v288 = vld [vmem:[%s260 + $0xd0] sm:$0xff]
                  %289 = vst [vmem:[%s261 + $0x68] sm:$0xff] %v288
                  %v290 = vld [vmem:[%s260 + $0xe0] sm:$0xff]
                  %291 = vst [vmem:[%s261 + $0x70] sm:$0xff] %v290
                  %v292 = vld [vmem:[%s260 + $0xf0] sm:$0xff]
                  %293 = vst [vmem:[%s261 + $0x78] sm:$0xff] %v292
                $region64: #{_emma_sage_impl.1} parent=58 // loop_footer
                  %s259 = sadd.s32 1, %s255
                $region65: #{_emma_sage_impl.1} parent=58 // loop_footer_branch
                  %254 = sbr.rel target = $region61
                $region66: #{_emma_sage_impl.1} parent=58 // loop_exit
                  _
              $region59: #{_emma_sage_impl.1} parent=43 // pred_fallthru
                _
              // Predicated region
              $region67: #{_emma_sage_impl.1} parent=43 // pred_check
                _
              $region68: #{_emma_sage_impl.1} parent=43 // pred_check_branch
                %295 = sbr.rel target = $region70
              $region69: #{_emma_sage_impl.1} parent=43 // pred_region
                _
              $region70: #{_emma_sage_impl.1} parent=43 // pred_fallthru
                _
            $region44: #{_emma_sage_impl.1} parent=39 // pred_fallthru
              _
            // Predicated region
            $region45: #{_emma_sage_impl.1} parent=39 // pred_check
              _
            $region46: #{_emma_sage_impl.1} parent=39 // pred_check_branch
              %210 = sbr.rel target = $region48
            $region47: #{_emma_sage_impl.1} parent=39 // pred_region
              loop: start=0, step=1, limit=1
              $region49: #{_emma_sage_impl.1} parent=47 // loop_pre_header
                _
              $region50: #{_emma_sage_impl.1} parent=47 // loop_header
                %s213 = sphi 0, %s217
                %p214 = scmp.ge.s32.totalorder %s213, 1
                %s218 = sphi %s204, %s204
                %s219 = sphi %s198, %s198
              $region51: #{_emma_sage_impl.1} parent=47 // loop_header_branch
                %216 = sbr.rel (%p214) target = $region55
              $region52: #{_emma_sage_impl.1} parent=47 // loop_body
                %v220 = vld [vmem:[%s218] sm:$0xff]
                %221 = vst [vmem:[%s219] sm:$0xff] %v220
                %v222 = vld [vmem:[%s218 + $0x10] sm:$0xff]
                %223 = vst [vmem:[%s219 + $0x8] sm:$0xff] %v222
                %v224 = vld [vmem:[%s218 + $0x20] sm:$0xff]
                %225 = vst [vmem:[%s219 + $0x10] sm:$0xff] %v224
                %v226 = vld [vmem:[%s218 + $0x30] sm:$0xff]
                %227 = vst [vmem:[%s219 + $0x18] sm:$0xff] %v226
                %v228 = vld [vmem:[%s218 + $0x40] sm:$0xff]
                %229 = vst [vmem:[%s219 + $0x20] sm:$0xff] %v228
                %v230 = vld [vmem:[%s218 + $0x50] sm:$0xff]
                %231 = vst [vmem:[%s219 + $0x28] sm:$0xff] %v230
                %v232 = vld [vmem:[%s218 + $0x60] sm:$0xff]
                %233 = vst [vmem:[%s219 + $0x30] sm:$0xff] %v232
                %v234 = vld [vmem:[%s218 + $0x70] sm:$0xff]
                %235 = vst [vmem:[%s219 + $0x38] sm:$0xff] %v234
                %v236 = vld [vmem:[%s218 + $0x80] sm:$0xff]
                %237 = vst [vmem:[%s219 + $0x40] sm:$0xff] %v236
                %v238 = vld [vmem:[%s218 + $0x90] sm:$0xff]
                %239 = vst [vmem:[%s219 + $0x48] sm:$0xff] %v238
                %v240 = vld [vmem:[%s218 + $0xa0] sm:$0xff]
                %241 = vst [vmem:[%s219 + $0x50] sm:$0xff] %v240
                %v242 = vld [vmem:[%s218 + $0xb0] sm:$0xff]
                %243 = vst [vmem:[%s219 + $0x58] sm:$0xff] %v242
                %v244 = vld [vmem:[%s218 + $0xc0] sm:$0xff]
                %245 = vst [vmem:[%s219 + $0x60] sm:$0xff] %v244
                %v246 = vld [vmem:[%s218 + $0xd0] sm:$0xff]
                %247 = vst [vmem:[%s219 + $0x68] sm:$0xff] %v246
                %v248 = vld [vmem:[%s218 + $0xe0] sm:$0xff]
                %249 = vst [vmem:[%s219 + $0x70] sm:$0xff] %v248
                %v250 = vld [vmem:[%s218 + $0xf0] sm:$0xff]
                %251 = vst [vmem:[%s219 + $0x78] sm:$0xff] %v250
              $region53: #{_emma_sage_impl.1} parent=47 // loop_footer
                %s217 = sadd.s32 1, %s213
              $region54: #{_emma_sage_impl.1} parent=47 // loop_footer_branch
                %212 = sbr.rel target = $region50
              $region55: #{_emma_sage_impl.1} parent=47 // loop_exit
                _
            $region48: #{_emma_sage_impl.1} parent=39 // pred_fallthru
              _
          $region40: #{_emma_sage_impl.1} parent=35 // pred_fallthru
            _
          %296 = vnop
        $region36: #{_emma_sage_impl.1} parent=31 // pred_fallthru
          _
      $region32: #{_emma_sage_impl.1} parent=5 // pred_fallthru
        _
      %p297 = scmp.le.s32.totalorder 1, %s11
      %p298 = scmp.lt.s32.totalorder %s11, 9
      %p299 = pnand %p297, %p298
      %p300 = pneg %p299
      // Predicated region
      $region71: #{_emma_sage_impl.1} parent=5 // pred_check
        _
      $region72: #{_emma_sage_impl.1} parent=5 // pred_check_branch
        %302 = sbr.rel (%p299) target = $region74
      $region73: #{_emma_sage_impl.1} parent=5 // pred_region
        %s303 = ssub.s32 %s11, 1
        %s304 = sand.u32 %s38, 1
        %s305 = sand.u32 %s38, 1
        %s306 = smul.addr %s305, 128
        %s307 = scalar_lea.vmem [#allocation3], %s306
        // Predicated region
        $region75: #{_emma_sage_impl.1} parent=73 // pred_check
          %p308 = pneg %p51
        $region76: #{_emma_sage_impl.1} parent=73 // pred_check_branch
          %310 = sbr.rel (%p308) target = $region78
        $region77: #{_emma_sage_impl.1} parent=73 // pred_region
          _
        $region78: #{_emma_sage_impl.1} parent=73 // pred_fallthru
          _
        %s311 = sand.u32 %s38, 1
        %s312 = sand.u32 %s38, 1
        %s313 = smul.addr %s312, 128
        %s314 = scalar_lea.vmem [#allocation3], %s313
        %p315 = pneg %p51
        %p316 = pneg %p48
        %p317 = pneg %p72
        %p318 = pneg %p69
        %p319 = pneg %p93
        %p320 = pneg %p90
        %p321 = pneg %p114
        %p322 = pneg %p111
        %p323 = pneg %p135
        %p324 = pneg %p132
        %p325 = pneg %p161
        %p326 = pneg %p158
        %s327 = smul.u32 16, %s20
        %p328 = scmp.lt.s32.totalorder %s327, 63
        %s329 = scalar_select %p328, %s327, 63
        %s330 = smul.addr %s329, 8
        %s331 = scalar_lea.vmem %s5, %s330
        %s332 = smul.u32 16, %s20
        %s333 = smul.u32 2, %s21
        %s334 = smul.u32 16, %s20
        %p335 = scmp.lt.s32.totalorder %s334, 63
        %s336 = scalar_select %p335, %s334, 63
        %s337 = smul.addr %s336, 8
        %s338 = scalar_lea.vmem %s5, %s337
        %s339 = smul.u32 16, %s20
        %p341 = scmp.eq.s32.totalorder %s21, 0
        // Predicated region
        $region79: #{_emma_sage_impl.1} parent=73 // pred_check
          %p342 = pneg %p341
        $region80: #{_emma_sage_impl.1} parent=73 // pred_check_branch
          %344 = sbr.rel (%p342) target = $region82
        $region81: #{_emma_sage_impl.1} parent=73 // pred_region
          %345 = vst [vmem:[#allocation2] sm:$0xff] 0.0
          %346 = vst [vmem:[#allocation2 + $0x8] sm:$0xff] 0.0
          %347 = vst [vmem:[#allocation2 + $0x10] sm:$0xff] 0.0
          %348 = vst [vmem:[#allocation2 + $0x18] sm:$0xff] 0.0
          %349 = vst [vmem:[#allocation2 + $0x20] sm:$0xff] 0.0
          %350 = vst [vmem:[#allocation2 + $0x28] sm:$0xff] 0.0
          %351 = vst [vmem:[#allocation2 + $0x30] sm:$0xff] 0.0
          %352 = vst [vmem:[#allocation2 + $0x38] sm:$0xff] 0.0
          %353 = vst [vmem:[#allocation2 + $0x40] sm:$0xff] 0.0
          %354 = vst [vmem:[#allocation2 + $0x48] sm:$0xff] 0.0
          %355 = vst [vmem:[#allocation2 + $0x50] sm:$0xff] 0.0
          %356 = vst [vmem:[#allocation2 + $0x58] sm:$0xff] 0.0
          %357 = vst [vmem:[#allocation2 + $0x60] sm:$0xff] 0.0
          %358 = vst [vmem:[#allocation2 + $0x68] sm:$0xff] 0.0
          %359 = vst [vmem:[#allocation2 + $0x70] sm:$0xff] 0.0
          %360 = vst [vmem:[#allocation2 + $0x78] sm:$0xff] 0.0
        $region82: #{_emma_sage_impl.1} parent=73 // pred_fallthru
          _
        %s361 = smul.u32 %s21, 256
        %s362 = sshra.s32 %s361, 3
        %s363 = sand.u32 %s361, 7
        %s364 = smul.addr %s362, 4
        %s365 = scalar_lea.vmem %s1, %s364
        %v366 = vld [vmem:[%s365] sm:$0xf]
        %v367 = vld [vmem:[%s365 + $0x4] sm:$0xf]
        %v368 = vld [vmem:[%s365 + $0x8] sm:$0xf]
        %v369 = vld [vmem:[%s365 + $0xc] sm:$0xf]
        %v370 = vld [vmem:[%s365 + $0x10] sm:$0xf]
        %v371 = vld [vmem:[%s365 + $0x14] sm:$0xf]
        %v372 = vld [vmem:[%s365 + $0x18] sm:$0xf]
        %v373 = vld [vmem:[%s365 + $0x1c] sm:$0xf]
        %v374 = vld [vmem:[%s365 + $0x20] sm:$0xf]
        %v375 = vld [vmem:[%s365 + $0x24] sm:$0xf]
        %v376 = vld [vmem:[%s365 + $0x28] sm:$0xf]
        %v377 = vld [vmem:[%s365 + $0x2c] sm:$0xf]
        %v378 = vld [vmem:[%s365 + $0x30] sm:$0xf]
        %v379 = vld [vmem:[%s365 + $0x34] sm:$0xf]
        %v380 = vld [vmem:[%s365 + $0x38] sm:$0xf]
        %v381 = vld [vmem:[%s365 + $0x3c] sm:$0xf]
        %v382 = vld [vmem:[%s365 + $0x40] sm:$0xf]
        %v383 = vld [vmem:[%s365 + $0x44] sm:$0xf]
        %v384 = vld [vmem:[%s365 + $0x48] sm:$0xf]
        %v385 = vld [vmem:[%s365 + $0x4c] sm:$0xf]
        %v386 = vld [vmem:[%s365 + $0x50] sm:$0xf]
        %v387 = vld [vmem:[%s365 + $0x54] sm:$0xf]
        %v388 = vld [vmem:[%s365 + $0x58] sm:$0xf]
        %v389 = vld [vmem:[%s365 + $0x5c] sm:$0xf]
        %v390 = vld [vmem:[%s365 + $0x60] sm:$0xf]
        %v391 = vld [vmem:[%s365 + $0x64] sm:$0xf]
        %v392 = vld [vmem:[%s365 + $0x68] sm:$0xf]
        %v393 = vld [vmem:[%s365 + $0x6c] sm:$0xf]
        %v394 = vld [vmem:[%s365 + $0x70] sm:$0xf]
        %v395 = vld [vmem:[%s365 + $0x74] sm:$0xf]
        %v396 = vld [vmem:[%s365 + $0x78] sm:$0xf]
        %v397 = vld [vmem:[%s365 + $0x7c] sm:$0xf]
        %v398 = vld [vmem:[#allocation2] sm:$0xff]
        %v399 = vld [vmem:[#allocation2 + $0x8] sm:$0xff]
        %v400 = vld [vmem:[#allocation2 + $0x10] sm:$0xff]
        %v401 = vld [vmem:[#allocation2 + $0x18] sm:$0xff]
        %v402 = vld [vmem:[#allocation2 + $0x20] sm:$0xff]
        %v403 = vld [vmem:[#allocation2 + $0x28] sm:$0xff]
        %v404 = vld [vmem:[#allocation2 + $0x30] sm:$0xff]
        %v405 = vld [vmem:[#allocation2 + $0x38] sm:$0xff]
        %v406 = vld [vmem:[#allocation2 + $0x40] sm:$0xff]
        %v407 = vld [vmem:[#allocation2 + $0x48] sm:$0xff]
        %v408 = vld [vmem:[#allocation2 + $0x50] sm:$0xff]
        %v409 = vld [vmem:[#allocation2 + $0x58] sm:$0xff]
        %v410 = vld [vmem:[#allocation2 + $0x60] sm:$0xff]
        %v411 = vld [vmem:[#allocation2 + $0x68] sm:$0xff]
        %v412 = vld [vmem:[#allocation2 + $0x70] sm:$0xff]
        %v413 = vld [vmem:[#allocation2 + $0x78] sm:$0xff]
        %v414 = vld [vmem:[%s307] sm:$0xff]
        %v415 = vld [vmem:[%s307 + $0x8] sm:$0xff]
        %v416 = vld [vmem:[%s307 + $0x10] sm:$0xff]
        %v417 = vld [vmem:[%s307 + $0x18] sm:$0xff]
        %v418 = vld [vmem:[%s307 + $0x20] sm:$0xff]
        %v419 = vld [vmem:[%s307 + $0x28] sm:$0xff]
        %v420 = vld [vmem:[%s307 + $0x30] sm:$0xff]
        %v421 = vld [vmem:[%s307 + $0x38] sm:$0xff]
        %v422 = vld [vmem:[%s307 + $0x40] sm:$0xff]
        %v423 = vld [vmem:[%s307 + $0x48] sm:$0xff]
        %v424 = vld [vmem:[%s307 + $0x50] sm:$0xff]
        %v425 = vld [vmem:[%s307 + $0x58] sm:$0xff]
        %v426 = vld [vmem:[%s307 + $0x60] sm:$0xff]
        %v427 = vld [vmem:[%s307 + $0x68] sm:$0xff]
        %v428 = vld [vmem:[%s307 + $0x70] sm:$0xff]
        %v429 = vld [vmem:[%s307 + $0x78] sm:$0xff]
        %v446 = vunpack.c.l.b16 %v414
        %v447 = vunpack.c.h.b16 %v414
        %v448 = vunpack.c.l.b16 %v415
        %v449 = vunpack.c.h.b16 %v415
        %v450 = vunpack.c.l.b16 %v416
        %v451 = vunpack.c.h.b16 %v416
        %v452 = vunpack.c.l.b16 %v417
        %v453 = vunpack.c.h.b16 %v417
        %v454 = vunpack.c.l.b16 %v418
        %v455 = vunpack.c.h.b16 %v418
        %v456 = vunpack.c.l.b16 %v419
        %v457 = vunpack.c.h.b16 %v419
        %v458 = vunpack.c.l.b16 %v420
        %v459 = vunpack.c.h.b16 %v420
        %v460 = vunpack.c.l.b16 %v421
        %v461 = vunpack.c.h.b16 %v421
        %v462 = vunpack.c.l.b16 %v422
        %v463 = vunpack.c.h.b16 %v422
        %v464 = vunpack.c.l.b16 %v423
        %v465 = vunpack.c.h.b16 %v423
        %v466 = vunpack.c.l.b16 %v424
        %v467 = vunpack.c.h.b16 %v424
        %v468 = vunpack.c.l.b16 %v425
        %v469 = vunpack.c.h.b16 %v425
        %v470 = vunpack.c.l.b16 %v426
        %v471 = vunpack.c.h.b16 %v426
        %v472 = vunpack.c.l.b16 %v427
        %v473 = vunpack.c.h.b16 %v427
        %v474 = vunpack.c.l.b16 %v428
        %v475 = vunpack.c.h.b16 %v428
        %v476 = vunpack.c.l.b16 %v429
        %v477 = vunpack.c.h.b16 %v429
        %v478 = vpack.c.b16 %v448, %v446
        %v479 = vpack.c.b16 %v449, %v447
        %v480 = vpack.c.b16 %v452, %v450
        %v481 = vpack.c.b16 %v453, %v451
        %v482 = vpack.c.b16 %v456, %v454
        %v483 = vpack.c.b16 %v457, %v455
        %v484 = vpack.c.b16 %v460, %v458
        %v485 = vpack.c.b16 %v461, %v459
        %v486 = vpack.c.b16 %v464, %v462
        %v487 = vpack.c.b16 %v465, %v463
        %v488 = vpack.c.b16 %v468, %v466
        %v489 = vpack.c.b16 %v469, %v467
        %v490 = vpack.c.b16 %v472, %v470
        %v491 = vpack.c.b16 %v473, %v471
        %v492 = vpack.c.b16 %v476, %v474
        %v493 = vpack.c.b16 %v477, %v475
        %v542 = vunpack.c.l.b16 %v366
        %v543 = vunpack.c.l.b16 %v367
        %v544 = vunpack.c.l.b16 %v368
        %v545 = vunpack.c.l.b16 %v369
        %v546 = vunpack.c.l.b16 %v370
        %v547 = vunpack.c.l.b16 %v371
        %v548 = vunpack.c.l.b16 %v372
        %v549 = vunpack.c.l.b16 %v373
        %v550 = vunpack.c.l.b16 %v374
        %v551 = vunpack.c.l.b16 %v375
        %v552 = vunpack.c.l.b16 %v376
        %v553 = vunpack.c.l.b16 %v377
        %v554 = vunpack.c.l.b16 %v378
        %v555 = vunpack.c.l.b16 %v379
        %v556 = vunpack.c.l.b16 %v380
        %v557 = vunpack.c.l.b16 %v381
        %v558 = vunpack.c.l.b16 %v382
        %v559 = vunpack.c.l.b16 %v383
        %v560 = vunpack.c.l.b16 %v384
        %v561 = vunpack.c.l.b16 %v385
        %v562 = vunpack.c.l.b16 %v386
        %v563 = vunpack.c.l.b16 %v387
        %v564 = vunpack.c.l.b16 %v388
        %v565 = vunpack.c.l.b16 %v389
        %v566 = vunpack.c.l.b16 %v390
        %v567 = vunpack.c.l.b16 %v391
        %v568 = vunpack.c.l.b16 %v392
        %v569 = vunpack.c.l.b16 %v393
        %v570 = vunpack.c.l.b16 %v394
        %v571 = vunpack.c.l.b16 %v395
        %v572 = vunpack.c.l.b16 %v396
        %v573 = vunpack.c.l.b16 %v397
        %v574 = vpack.c.b16 %v543, %v542
        %v575 = vpack.c.b16 %v545, %v544
        %v576 = vpack.c.b16 %v547, %v546
        %v577 = vpack.c.b16 %v549, %v548
        %v578 = vpack.c.b16 %v551, %v550
        %v579 = vpack.c.b16 %v553, %v552
        %v580 = vpack.c.b16 %v555, %v554
        %v581 = vpack.c.b16 %v557, %v556
        %v582 = vpack.c.b16 %v559, %v558
        %v583 = vpack.c.b16 %v561, %v560
        %v584 = vpack.c.b16 %v563, %v562
        %v585 = vpack.c.b16 %v565, %v564
        %v586 = vpack.c.b16 %v567, %v566
        %v587 = vpack.c.b16 %v569, %v568
        %v588 = vpack.c.b16 %v571, %v570
        %v589 = vpack.c.b16 %v573, %v572
        %606 = vmatprep.subr.bf16.mxu0 0
        %607 = vmatpush1.bf16.msra.mxu0 %v574
        %608 = vmatprep.subr.bf16.mxu0 0
        %609 = vmatpush1.bf16.msra.mxu0 %v575
        %610 = vmatprep.subr.bf16.mxu0 0
        %611 = vmatpush1.bf16.msra.mxu0 %v576
        %612 = vmatprep.subr.bf16.mxu0 0
        %613 = vmatpush1.bf16.msra.mxu0 %v577
        %614 = vmatprep.subr.bf16.mxu0 0
        %615 = vmatpush1.bf16.msra.mxu0 %v578
        %616 = vmatprep.subr.bf16.mxu0 0
        %617 = vmatpush1.bf16.msra.mxu0 %v579
        %618 = vmatprep.subr.bf16.mxu0 0
        %619 = vmatpush1.bf16.msra.mxu0 %v580
        %620 = vmatprep.subr.bf16.mxu0 0
        %621 = vmatpush1.bf16.msra.mxu0 %v581
        %622 = vmatprep.subr.bf16.mxu0 0
        %623 = vmatpush1.bf16.msra.mxu0 %v582
        %624 = vmatprep.subr.bf16.mxu0 0
        %625 = vmatpush1.bf16.msra.mxu0 %v583
        %626 = vmatprep.subr.bf16.mxu0 0
        %627 = vmatpush1.bf16.msra.mxu0 %v584
        %628 = vmatprep.subr.bf16.mxu0 0
        %629 = vmatpush1.bf16.msra.mxu0 %v585
        %630 = vmatprep.subr.bf16.mxu0 0
        %631 = vmatpush1.bf16.msra.mxu0 %v586
        %632 = vmatprep.subr.bf16.mxu0 0
        %633 = vmatpush1.bf16.msra.mxu0 %v587
        %634 = vmatprep.subr.bf16.mxu0 0
        %635 = vmatpush1.bf16.msra.mxu0 %v588
        %636 = vmatprep.subr.bf16.mxu0 0
        %637 = vmatpush1.bf16.msra.mxu0 %v589
        %638 = vmatprep.mubr.bf16.mxu0 %v479
        %639 = vmatmul.mubr.bf16.gmra.mrb[0].mxu0 %v478
        %v640 = vpop.f32.mrb[0].mxu0
        %v641 = vadd.f32 0.0, %v640
        %v642 = vpop.f32.mrb[0].mxu0
        %v643 = vpop.f32.mrb[0].mxu0
        %v644 = vadd.f32 0.0, %v643
        %v645 = vpop.f32.mrb[0].mxu0
        %646 = vmatprep.mubr.bf16.mxu0 %v481
        %647 = vmatmul.mubr.bf16.gmra.mrb[0].mxu0 %v480
        %v648 = vpop.f32.mrb[0].mxu0
        %v649 = vadd.f32 0.0, %v648
        %v650 = vpop.f32.mrb[0].mxu0
        %v651 = vpop.f32.mrb[0].mxu0
        %v652 = vadd.f32 0.0, %v651
        %v653 = vpop.f32.mrb[0].mxu0
        %654 = vmatprep.mubr.bf16.mxu0 %v483
        %655 = vmatmul.mubr.bf16.gmra.mrb[0].mxu0 %v482
        %v656 = vpop.f32.mrb[0].mxu0
        %v657 = vadd.f32 0.0, %v656
        %v658 = vpop.f32.mrb[0].mxu0
        %v659 = vpop.f32.mrb[0].mxu0
        %v660 = vadd.f32 0.0, %v659
        %v661 = vpop.f32.mrb[0].mxu0
        %662 = vmatprep.mubr.bf16.mxu0 %v485
        %663 = vmatmul.mubr.bf16.gmra.mrb[0].mxu0 %v484
        %v664 = vpop.f32.mrb[0].mxu0
        %v665 = vadd.f32 0.0, %v664
        %v666 = vpop.f32.mrb[0].mxu0
        %v667 = vpop.f32.mrb[0].mxu0
        %v668 = vadd.f32 0.0, %v667
        %v669 = vpop.f32.mrb[0].mxu0
        %670 = vmatprep.mubr.bf16.mxu0 %v487
        %671 = vmatmul.mubr.bf16.gmra.mrb[0].mxu0 %v486
        %v672 = vpop.f32.mrb[0].mxu0
        %v673 = vadd.f32 0.0, %v672
        %v674 = vpop.f32.mrb[0].mxu0
        %v675 = vpop.f32.mrb[0].mxu0
        %v676 = vadd.f32 0.0, %v675
        %v677 = vpop.f32.mrb[0].mxu0
        %678 = vmatprep.mubr.bf16.mxu0 %v489
        %679 = vmatmul.mubr.bf16.gmra.mrb[0].mxu0 %v488
        %v680 = vpop.f32.mrb[0].mxu0
        %v681 = vadd.f32 0.0, %v680
        %v682 = vpop.f32.mrb[0].mxu0
        %v683 = vpop.f32.mrb[0].mxu0
        %v684 = vadd.f32 0.0, %v683
        %v685 = vpop.f32.mrb[0].mxu0
        %686 = vmatprep.mubr.bf16.mxu0 %v491
        %687 = vmatmul.mubr.bf16.gmra.mrb[0].mxu0 %v490
        %v688 = vpop.f32.mrb[0].mxu0
        %v689 = vadd.f32 0.0, %v688
        %v690 = vpop.f32.mrb[0].mxu0
        %v691 = vpop.f32.mrb[0].mxu0
        %v692 = vadd.f32 0.0, %v691
        %v693 = vpop.f32.mrb[0].mxu0
        %694 = vmatprep.mubr.bf16.mxu0 %v493
        %695 = vmatmul.mubr.bf16.gmra.mrb[0].mxu0 %v492
        %v696 = vpop.f32.mrb[0].mxu0
        %v697 = vadd.f32 0.0, %v696
        %v698 = vpop.f32.mrb[0].mxu0
        %v699 = vpop.f32.mrb[0].mxu0
        %v700 = vadd.f32 0.0, %v699
        %v701 = vpop.f32.mrb[0].mxu0
        %702 = vdwg.mxu0
        %v703 = vadd.f32 %v398, %v641
        %v704 = vadd.f32 %v399, %v644
        %v705 = vadd.f32 %v400, %v649
        %v706 = vadd.f32 %v401, %v652
        %v707 = vadd.f32 %v402, %v657
        %v708 = vadd.f32 %v403, %v660
        %v709 = vadd.f32 %v404, %v665
        %v710 = vadd.f32 %v405, %v668
        %v711 = vadd.f32 %v406, %v673
        %v712 = vadd.f32 %v407, %v676
        %v713 = vadd.f32 %v408, %v681
        %v714 = vadd.f32 %v409, %v684
        %v715 = vadd.f32 %v410, %v689
        %v716 = vadd.f32 %v411, %v692
        %v717 = vadd.f32 %v412, %v697
        %v718 = vadd.f32 %v413, %v700
        %719 = vst [vmem:[#allocation2] sm:$0xff] %v703
        %720 = vst [vmem:[#allocation2 + $0x8] sm:$0xff] %v704
        %721 = vst [vmem:[#allocation2 + $0x10] sm:$0xff] %v705
        %722 = vst [vmem:[#allocation2 + $0x18] sm:$0xff] %v706
        %723 = vst [vmem:[#allocation2 + $0x20] sm:$0xff] %v707
        %724 = vst [vmem:[#allocation2 + $0x28] sm:$0xff] %v708
        %725 = vst [vmem:[#allocation2 + $0x30] sm:$0xff] %v709
        %726 = vst [vmem:[#allocation2 + $0x38] sm:$0xff] %v710
        %727 = vst [vmem:[#allocation2 + $0x40] sm:$0xff] %v711
        %728 = vst [vmem:[#allocation2 + $0x48] sm:$0xff] %v712
        %729 = vst [vmem:[#allocation2 + $0x50] sm:$0xff] %v713
        %730 = vst [vmem:[#allocation2 + $0x58] sm:$0xff] %v714
        %731 = vst [vmem:[#allocation2 + $0x60] sm:$0xff] %v715
        %732 = vst [vmem:[#allocation2 + $0x68] sm:$0xff] %v716
        %733 = vst [vmem:[#allocation2 + $0x70] sm:$0xff] %v717
        %734 = vst [vmem:[#allocation2 + $0x78] sm:$0xff] %v718
        %p735 = scmp.eq.s32.totalorder %s21, 1
        // Predicated region
        $region83: #{_emma_sage_impl.1} parent=73 // pred_check
          %p736 = pneg %p735
        $region84: #{_emma_sage_impl.1} parent=73 // pred_check_branch
          %738 = sbr.rel (%p736) target = $region86
        $region85: #{_emma_sage_impl.1} parent=73 // pred_region
          %v739 = vld [vmem:[#allocation2] sm:$0xff]
          %v740 = vld [vmem:[#allocation2 + $0x8] sm:$0xff]
          %v741 = vld [vmem:[#allocation2 + $0x10] sm:$0xff]
          %v742 = vld [vmem:[#allocation2 + $0x18] sm:$0xff]
          %v743 = vld [vmem:[#allocation2 + $0x20] sm:$0xff]
          %v744 = vld [vmem:[#allocation2 + $0x28] sm:$0xff]
          %v745 = vld [vmem:[#allocation2 + $0x30] sm:$0xff]
          %v746 = vld [vmem:[#allocation2 + $0x38] sm:$0xff]
          %v747 = vld [vmem:[#allocation2 + $0x40] sm:$0xff]
          %v748 = vld [vmem:[#allocation2 + $0x48] sm:$0xff]
          %v749 = vld [vmem:[#allocation2 + $0x50] sm:$0xff]
          %v750 = vld [vmem:[#allocation2 + $0x58] sm:$0xff]
          %v751 = vld [vmem:[#allocation2 + $0x60] sm:$0xff]
          %v752 = vld [vmem:[#allocation2 + $0x68] sm:$0xff]
          %v753 = vld [vmem:[#allocation2 + $0x70] sm:$0xff]
          %v754 = vld [vmem:[#allocation2 + $0x78] sm:$0xff]
          %vm755 = vcmp.eq.f32.partialorder %v739, 0.0
          %vm756 = vcmp.eq.f32.partialorder %v740, 0.0
          %vm757 = vcmp.eq.f32.partialorder %v741, 0.0
          %vm758 = vcmp.eq.f32.partialorder %v742, 0.0
          %vm759 = vcmp.eq.f32.partialorder %v743, 0.0
          %vm760 = vcmp.eq.f32.partialorder %v744, 0.0
          %vm761 = vcmp.eq.f32.partialorder %v745, 0.0
          %vm762 = vcmp.eq.f32.partialorder %v746, 0.0
          %vm763 = vcmp.eq.f32.partialorder %v747, 0.0
          %vm764 = vcmp.eq.f32.partialorder %v748, 0.0
          %vm765 = vcmp.eq.f32.partialorder %v749, 0.0
          %vm766 = vcmp.eq.f32.partialorder %v750, 0.0
          %vm767 = vcmp.eq.f32.partialorder %v751, 0.0
          %vm768 = vcmp.eq.f32.partialorder %v752, 0.0
          %vm769 = vcmp.eq.f32.partialorder %v753, 0.0
          %vm770 = vcmp.eq.f32.partialorder %v754, 0.0
          %v771 = vrcp.pop %v739
          %v772 = vrcp.pop %v740
          %v773 = vrcp.pop %v741
          %v774 = vrcp.pop %v742
          %v775 = vrcp.pop %v743
          %v776 = vrcp.pop %v744
          %v777 = vrcp.pop %v745
          %v778 = vrcp.pop %v746
          %v779 = vrcp.pop %v747
          %v780 = vrcp.pop %v748
          %v781 = vrcp.pop %v749
          %v782 = vrcp.pop %v750
          %v783 = vrcp.pop %v751
          %v784 = vrcp.pop %v752
          %v785 = vrcp.pop %v753
          %v786 = vrcp.pop %v754
          %v787 = vsel %vm755, 0.0, %v771
          %v788 = vsel %vm756, 0.0, %v772
          %v789 = vsel %vm757, 0.0, %v773
          %v790 = vsel %vm758, 0.0, %v774
          %v791 = vsel %vm759, 0.0, %v775
          %v792 = vsel %vm760, 0.0, %v776
          %v793 = vsel %vm761, 0.0, %v777
          %v794 = vsel %vm762, 0.0, %v778
          %v795 = vsel %vm763, 0.0, %v779
          %v796 = vsel %vm764, 0.0, %v780
          %v797 = vsel %vm765, 0.0, %v781
          %v798 = vsel %vm766, 0.0, %v782
          %v799 = vsel %vm767, 0.0, %v783
          %v800 = vsel %vm768, 0.0, %v784
          %v801 = vsel %vm769, 0.0, %v785
          %v802 = vsel %vm770, 0.0, %v786
          %804 = vset.pattern.permute.xlu0 32
          %805 = vperm.xlu0 %804, %v787
          %v806 = vpop.permute.xlu0 %805
          %809 = vset.pattern.permute.xlu0 32
          %810 = vperm.xlu0 %809, %v788
          %v811 = vpop.permute.xlu0 %810
          %814 = vset.pattern.permute.xlu0 32
          %815 = vperm.xlu0 %814, %v789
          %v816 = vpop.permute.xlu0 %815
          %819 = vset.pattern.permute.xlu0 32
          %820 = vperm.xlu0 %819, %v790
          %v821 = vpop.permute.xlu0 %820
          %824 = vset.pattern.permute.xlu0 32
          %825 = vperm.xlu0 %824, %v791
          %v826 = vpop.permute.xlu0 %825
          %829 = vset.pattern.permute.xlu0 32
          %830 = vperm.xlu0 %829, %v792
          %v831 = vpop.permute.xlu0 %830
          %834 = vset.pattern.permute.xlu0 32
          %835 = vperm.xlu0 %834, %v793
          %v836 = vpop.permute.xlu0 %835
          %839 = vset.pattern.permute.xlu0 32
          %840 = vperm.xlu0 %839, %v794
          %v841 = vpop.permute.xlu0 %840
          %844 = vset.pattern.permute.xlu0 32
          %845 = vperm.xlu0 %844, %v795
          %v846 = vpop.permute.xlu0 %845
          %849 = vset.pattern.permute.xlu0 32
          %850 = vperm.xlu0 %849, %v796
          %v851 = vpop.permute.xlu0 %850
          %854 = vset.pattern.permute.xlu0 32
          %855 = vperm.xlu0 %854, %v797
          %v856 = vpop.permute.xlu0 %855
          %859 = vset.pattern.permute.xlu0 32
          %860 = vperm.xlu0 %859, %v798
          %v861 = vpop.permute.xlu0 %860
          %864 = vset.pattern.permute.xlu0 32
          %865 = vperm.xlu0 %864, %v799
          %v866 = vpop.permute.xlu0 %865
          %869 = vset.pattern.permute.xlu0 32
          %870 = vperm.xlu0 %869, %v800
          %v871 = vpop.permute.xlu0 %870
          %874 = vset.pattern.permute.xlu0 32
          %875 = vperm.xlu0 %874, %v801
          %v876 = vpop.permute.xlu0 %875
          %879 = vset.pattern.permute.xlu0 32
          %880 = vperm.xlu0 %879, %v802
          %v881 = vpop.permute.xlu0 %880
          %v883 = vmul.f32 %v739, %v806
          %v884 = vmul.f32 %v740, %v811
          %v885 = vmul.f32 %v741, %v816
          %v886 = vmul.f32 %v742, %v821
          %v887 = vmul.f32 %v743, %v826
          %v888 = vmul.f32 %v744, %v831
          %v889 = vmul.f32 %v745, %v836
          %v890 = vmul.f32 %v746, %v841
          %v891 = vmul.f32 %v747, %v846
          %v892 = vmul.f32 %v748, %v851
          %v893 = vmul.f32 %v749, %v856
          %v894 = vmul.f32 %v750, %v861
          %v895 = vmul.f32 %v751, %v866
          %v896 = vmul.f32 %v752, %v871
          %v897 = vmul.f32 %v753, %v876
          %v898 = vmul.f32 %v754, %v881
          %s899 = smul.u32 %s20, 128
          %s900 = sshra.s32 %s899, 3
          %s901 = sand.u32 %s899, 7
          %s902 = smul.addr %s900, 4
          %s903 = scalar_lea.vmem %s1, %s902
          %v904 = vld [vmem:[%s903] sm:$0xf]
          %v905 = vld [vmem:[%s903 + $0x4] sm:$0xf]
          %v906 = vld [vmem:[%s903 + $0x8] sm:$0xf]
          %v907 = vld [vmem:[%s903 + $0xc] sm:$0xf]
          %v908 = vld [vmem:[%s903 + $0x10] sm:$0xf]
          %v909 = vld [vmem:[%s903 + $0x14] sm:$0xf]
          %v910 = vld [vmem:[%s903 + $0x18] sm:$0xf]
          %v911 = vld [vmem:[%s903 + $0x1c] sm:$0xf]
          %v912 = vld [vmem:[%s903 + $0x20] sm:$0xf]
          %v913 = vld [vmem:[%s903 + $0x24] sm:$0xf]
          %v914 = vld [vmem:[%s903 + $0x28] sm:$0xf]
          %v915 = vld [vmem:[%s903 + $0x2c] sm:$0xf]
          %v916 = vld [vmem:[%s903 + $0x30] sm:$0xf]
          %v917 = vld [vmem:[%s903 + $0x34] sm:$0xf]
          %v918 = vld [vmem:[%s903 + $0x38] sm:$0xf]
          %v919 = vld [vmem:[%s903 + $0x3c] sm:$0xf]
          %v920 = vunpack.c.l.bf16 %v904
          %v921 = vunpack.c.l.bf16 %v905
          %v922 = vunpack.c.l.bf16 %v906
          %v923 = vunpack.c.l.bf16 %v907
          %v924 = vunpack.c.l.bf16 %v908
          %v925 = vunpack.c.l.bf16 %v909
          %v926 = vunpack.c.l.bf16 %v910
          %v927 = vunpack.c.l.bf16 %v911
          %v928 = vunpack.c.l.bf16 %v912
          %v929 = vunpack.c.l.bf16 %v913
          %v930 = vunpack.c.l.bf16 %v914
          %v931 = vunpack.c.l.bf16 %v915
          %v932 = vunpack.c.l.bf16 %v916
          %v933 = vunpack.c.l.bf16 %v917
          %v934 = vunpack.c.l.bf16 %v918
          %v935 = vunpack.c.l.bf16 %v919
          %v936 = vld [vmem:[%s2] sm:$0xff]
          %v937 = vld [vmem:[%s2 + $0x8] sm:$0xff]
          %v938 = vld [vmem:[%s2 + $0x10] sm:$0xff]
          %v939 = vld [vmem:[%s2 + $0x18] sm:$0xff]
          %v940 = vld [vmem:[%s2 + $0x20] sm:$0xff]
          %v941 = vld [vmem:[%s2 + $0x28] sm:$0xff]
          %v942 = vld [vmem:[%s2 + $0x30] sm:$0xff]
          %v943 = vld [vmem:[%s2 + $0x38] sm:$0xff]
          %v944 = vld [vmem:[%s2 + $0x40] sm:$0xff]
          %v945 = vld [vmem:[%s2 + $0x48] sm:$0xff]
          %v946 = vld [vmem:[%s2 + $0x50] sm:$0xff]
          %v947 = vld [vmem:[%s2 + $0x58] sm:$0xff]
          %v948 = vld [vmem:[%s2 + $0x60] sm:$0xff]
          %v949 = vld [vmem:[%s2 + $0x68] sm:$0xff]
          %v950 = vld [vmem:[%s2 + $0x70] sm:$0xff]
          %v951 = vld [vmem:[%s2 + $0x78] sm:$0xff]
          %v952 = vld [vmem:[%s3] sm:$0xff]
          %v953 = vld [vmem:[%s3 + $0x8] sm:$0xff]
          %v954 = vld [vmem:[%s3 + $0x10] sm:$0xff]
          %v955 = vld [vmem:[%s3 + $0x18] sm:$0xff]
          %v956 = vld [vmem:[%s3 + $0x20] sm:$0xff]
          %v957 = vld [vmem:[%s3 + $0x28] sm:$0xff]
          %v958 = vld [vmem:[%s3 + $0x30] sm:$0xff]
          %v959 = vld [vmem:[%s3 + $0x38] sm:$0xff]
          %v960 = vld [vmem:[%s3 + $0x40] sm:$0xff]
          %v961 = vld [vmem:[%s3 + $0x48] sm:$0xff]
          %v962 = vld [vmem:[%s3 + $0x50] sm:$0xff]
          %v963 = vld [vmem:[%s3 + $0x58] sm:$0xff]
          %v964 = vld [vmem:[%s3 + $0x60] sm:$0xff]
          %v965 = vld [vmem:[%s3 + $0x68] sm:$0xff]
          %v966 = vld [vmem:[%s3 + $0x70] sm:$0xff]
          %v967 = vld [vmem:[%s3 + $0x78] sm:$0xff]
          %968 = vmatprep.subr.mxu0 0.0
          %969 = vmatpush1.msra.mxu0 %v952
          %970 = vmatprep.subr.mxu0 0.0
          %971 = vmatpush1.msra.mxu0 %v953
          %972 = vmatprep.subr.mxu0 0.0
          %973 = vmatpush1.msra.mxu0 %v954
          %974 = vmatprep.subr.mxu0 0.0
          %975 = vmatpush1.msra.mxu0 %v955
          %976 = vmatprep.subr.mxu0 0.0
          %977 = vmatpush1.msra.mxu0 %v956
          %978 = vmatprep.subr.mxu0 0.0
          %979 = vmatpush1.msra.mxu0 %v957
          %980 = vmatprep.subr.mxu0 0.0
          %981 = vmatpush1.msra.mxu0 %v958
          %982 = vmatprep.subr.mxu0 0.0
          %983 = vmatpush1.msra.mxu0 %v959
          %984 = vmatprep.subr.mxu0 0.0
          %985 = vmatpush1.msra.mxu0 %v960
          %986 = vmatprep.subr.mxu0 0.0
          %987 = vmatpush1.msra.mxu0 %v961
          %988 = vmatprep.subr.mxu0 0.0
          %989 = vmatpush1.msra.mxu0 %v962
          %990 = vmatprep.subr.mxu0 0.0
          %991 = vmatpush1.msra.mxu0 %v963
          %992 = vmatprep.subr.mxu0 0.0
          %993 = vmatpush1.msra.mxu0 %v964
          %994 = vmatprep.subr.mxu0 0.0
          %995 = vmatpush1.msra.mxu0 %v965
          %996 = vmatprep.subr.mxu0 0.0
          %997 = vmatpush1.msra.mxu0 %v966
          %998 = vmatprep.subr.mxu0 0.0
          %999 = vmatpush1.msra.mxu0 %v967
          %1000 = vmatprep.subr.mxu0 0.0
          %1001 = vmatpush1.msra.mxu0 0.0
          %1002 = vmatprep.subr.mxu0 0.0
          %1003 = vmatpush1.msra.mxu0 0.0
          %1004 = vmatprep.subr.mxu0 0.0
          %1005 = vmatpush1.msra.mxu0 0.0
          %1006 = vmatprep.subr.mxu0 0.0
          %1007 = vmatpush1.msra.mxu0 0.0
          %1008 = vmatprep.subr.mxu0 0.0
          %1009 = vmatpush1.msra.mxu0 0.0
          %1010 = vmatprep.subr.mxu0 0.0
          %1011 = vmatpush1.msra.mxu0 0.0
          %1012 = vmatprep.subr.mxu0 0.0
          %1013 = vmatpush1.msra.mxu0 0.0
          %1014 = vmatprep.subr.mxu0 0.0
          %1015 = vmatpush1.msra.mxu0 0.0
          %1016 = vmatprep.subr.mxu0 0.0
          %1017 = vmatpush1.msra.mxu0 0.0
          %1018 = vmatprep.subr.mxu0 0.0
          %1019 = vmatpush1.msra.mxu0 0.0
          %1020 = vmatprep.subr.mxu0 0.0
          %1021 = vmatpush1.msra.mxu0 0.0
          %1022 = vmatprep.subr.mxu0 0.0
          %1023 = vmatpush1.msra.mxu0 0.0
          %1024 = vmatprep.subr.mxu0 0.0
          %1025 = vmatpush1.msra.mxu0 0.0
          %1026 = vmatprep.subr.mxu0 0.0
          %1027 = vmatpush1.msra.mxu0 0.0
          %1028 = vmatprep.subr.mxu0 0.0
          %1029 = vmatpush1.msra.mxu0 0.0
          %1030 = vmatprep.subr.mxu0 0.0
          %1031 = vmatpush1.msra.mxu0 0.0
          %1032 = vmatprep.mubr.f32.mxu0 0.0
          %1033 = vmatmul.mubr.f32.gmra.mrb[0].mxu0 %v920
          %v1034 = vpop.f32.mrb[0].mxu0
          %v1035 = vadd.f32 0.0, %v1034
          %v1036 = vpop.f32.mrb[0].mxu0
          %1037 = vmatprep.mubr.f32.mxu0 0.0
          %1038 = vmatmul.mubr.f32.gmra.mrb[0].mxu0 %v921
          %v1039 = vpop.f32.mrb[0].mxu0
          %v1040 = vadd.f32 0.0, %v1039
          %v1041 = vpop.f32.mrb[0].mxu0
          %1042 = vmatprep.mubr.f32.mxu0 0.0
          %1043 = vmatmul.mubr.f32.gmra.mrb[0].mxu0 %v922
          %v1044 = vpop.f32.mrb[0].mxu0
          %v1045 = vadd.f32 0.0, %v1044
          %v1046 = vpop.f32.mrb[0].mxu0
          %1047 = vmatprep.mubr.f32.mxu0 0.0
          %1048 = vmatmul.mubr.f32.gmra.mrb[0].mxu0 %v923
          %v1049 = vpop.f32.mrb[0].mxu0
          %v1050 = vadd.f32 0.0, %v1049
          %v1051 = vpop.f32.mrb[0].mxu0
          %1052 = vmatprep.mubr.f32.mxu0 0.0
          %1053 = vmatmul.mubr.f32.gmra.mrb[0].mxu0 %v924
          %v1054 = vpop.f32.mrb[0].mxu0
          %v1055 = vadd.f32 0.0, %v1054
          %v1056 = vpop.f32.mrb[0].mxu0
          %1057 = vmatprep.mubr.f32.mxu0 0.0
          %1058 = vmatmul.mubr.f32.gmra.mrb[0].mxu0 %v925
          %v1059 = vpop.f32.mrb[0].mxu0
          %v1060 = vadd.f32 0.0, %v1059
          %v1061 = vpop.f32.mrb[0].mxu0
          %1062 = vmatprep.mubr.f32.mxu0 0.0
          %1063 = vmatmul.mubr.f32.gmra.mrb[0].mxu0 %v926
          %v1064 = vpop.f32.mrb[0].mxu0
          %v1065 = vadd.f32 0.0, %v1064
          %v1066 = vpop.f32.mrb[0].mxu0
          %1067 = vmatprep.mubr.f32.mxu0 0.0
          %1068 = vmatmul.mubr.f32.gmra.mrb[0].mxu0 %v927
          %v1069 = vpop.f32.mrb[0].mxu0
          %v1070 = vadd.f32 0.0, %v1069
          %v1071 = vpop.f32.mrb[0].mxu0
          %1072 = vmatprep.mubr.f32.mxu0 0.0
          %1073 = vmatmul.mubr.f32.gmra.mrb[0].mxu0 %v928
          %v1074 = vpop.f32.mrb[0].mxu0
          %v1075 = vadd.f32 0.0, %v1074
          %v1076 = vpop.f32.mrb[0].mxu0
          %1077 = vmatprep.mubr.f32.mxu0 0.0
          %1078 = vmatmul.mubr.f32.gmra.mrb[0].mxu0 %v929
          %v1079 = vpop.f32.mrb[0].mxu0
          %v1080 = vadd.f32 0.0, %v1079
          %v1081 = vpop.f32.mrb[0].mxu0
          %1082 = vmatprep.mubr.f32.mxu0 0.0
          %1083 = vmatmul.mubr.f32.gmra.mrb[0].mxu0 %v930
          %v1084 = vpop.f32.mrb[0].mxu0
          %v1085 = vadd.f32 0.0, %v1084
          %v1086 = vpop.f32.mrb[0].mxu0
          %1087 = vmatprep.mubr.f32.mxu0 0.0
          %1088 = vmatmul.mubr.f32.gmra.mrb[0].mxu0 %v931
          %v1089 = vpop.f32.mrb[0].mxu0
          %v1090 = vadd.f32 0.0, %v1089
          %v1091 = vpop.f32.mrb[0].mxu0
          %1092 = vmatprep.mubr.f32.mxu0 0.0
          %1093 = vmatmul.mubr.f32.gmra.mrb[0].mxu0 %v932
          %v1094 = vpop.f32.mrb[0].mxu0
          %v1095 = vadd.f32 0.0, %v1094
          %v1096 = vpop.f32.mrb[0].mxu0
          %1097 = vmatprep.mubr.f32.mxu0 0.0
          %1098 = vmatmul.mubr.f32.gmra.mrb[0].mxu0 %v933
          %v1099 = vpop.f32.mrb[0].mxu0
          %v1100 = vadd.f32 0.0, %v1099
          %v1101 = vpop.f32.mrb[0].mxu0
          %1102 = vmatprep.mubr.f32.mxu0 0.0
          %1103 = vmatmul.mubr.f32.gmra.mrb[0].mxu0 %v934
          %v1104 = vpop.f32.mrb[0].mxu0
          %v1105 = vadd.f32 0.0, %v1104
          %v1106 = vpop.f32.mrb[0].mxu0
          %1107 = vmatprep.mubr.f32.mxu0 0.0
          %1108 = vmatmul.mubr.f32.gmra.mrb[0].mxu0 %v935
          %v1109 = vpop.f32.mrb[0].mxu0
          %v1110 = vadd.f32 0.0, %v1109
          %v1111 = vpop.f32.mrb[0].mxu0
          %1112 = vdwg.mxu0
          %1113 = vmatprep.subr.mxu0 0.0
          %1114 = vmatpush1.msra.mxu0 %v936
          %1115 = vmatprep.subr.mxu0 0.0
          %1116 = vmatpush1.msra.mxu0 %v937
          %1117 = vmatprep.subr.mxu0 0.0
          %1118 = vmatpush1.msra.mxu0 %v938
          %1119 = vmatprep.subr.mxu0 0.0
          %1120 = vmatpush1.msra.mxu0 %v939
          %1121 = vmatprep.subr.mxu0 0.0
          %1122 = vmatpush1.msra.mxu0 %v940
          %1123 = vmatprep.subr.mxu0 0.0
          %1124 = vmatpush1.msra.mxu0 %v941
          %1125 = vmatprep.subr.mxu0 0.0
          %1126 = vmatpush1.msra.mxu0 %v942
          %1127 = vmatprep.subr.mxu0 0.0
          %1128 = vmatpush1.msra.mxu0 %v943
          %1129 = vmatprep.subr.mxu0 0.0
          %1130 = vmatpush1.msra.mxu0 %v944
          %1131 = vmatprep.subr.mxu0 0.0
          %1132 = vmatpush1.msra.mxu0 %v945
          %1133 = vmatprep.subr.mxu0 0.0
          %1134 = vmatpush1.msra.mxu0 %v946
          %1135 = vmatprep.subr.mxu0 0.0
          %1136 = vmatpush1.msra.mxu0 %v947
          %1137 = vmatprep.subr.mxu0 0.0
          %1138 = vmatpush1.msra.mxu0 %v948
          %1139 = vmatprep.subr.mxu0 0.0
          %1140 = vmatpush1.msra.mxu0 %v949
          %1141 = vmatprep.subr.mxu0 0.0
          %1142 = vmatpush1.msra.mxu0 %v950
          %1143 = vmatprep.subr.mxu0 0.0
          %1144 = vmatpush1.msra.mxu0 %v951
          %1145 = vmatprep.subr.mxu0 0.0
          %1146 = vmatpush1.msra.mxu0 0.0
          %1147 = vmatprep.subr.mxu0 0.0
          %1148 = vmatpush1.msra.mxu0 0.0
          %1149 = vmatprep.subr.mxu0 0.0
          %1150 = vmatpush1.msra.mxu0 0.0
          %1151 = vmatprep.subr.mxu0 0.0
          %1152 = vmatpush1.msra.mxu0 0.0
          %1153 = vmatprep.subr.mxu0 0.0
          %1154 = vmatpush1.msra.mxu0 0.0
          %1155 = vmatprep.subr.mxu0 0.0
          %1156 = vmatpush1.msra.mxu0 0.0
          %1157 = vmatprep.subr.mxu0 0.0
          %1158 = vmatpush1.msra.mxu0 0.0
          %1159 = vmatprep.subr.mxu0 0.0
          %1160 = vmatpush1.msra.mxu0 0.0
          %1161 = vmatprep.subr.mxu0 0.0
          %1162 = vmatpush1.msra.mxu0 0.0
          %1163 = vmatprep.subr.mxu0 0.0
          %1164 = vmatpush1.msra.mxu0 0.0
          %1165 = vmatprep.subr.mxu0 0.0
          %1166 = vmatpush1.msra.mxu0 0.0
          %1167 = vmatprep.subr.mxu0 0.0
          %1168 = vmatpush1.msra.mxu0 0.0
          %1169 = vmatprep.subr.mxu0 0.0
          %1170 = vmatpush1.msra.mxu0 0.0
          %1171 = vmatprep.subr.mxu0 0.0
          %1172 = vmatpush1.msra.mxu0 0.0
          %1173 = vmatprep.subr.mxu0 0.0
          %1174 = vmatpush1.msra.mxu0 0.0
          %1175 = vmatprep.subr.mxu0 0.0
          %1176 = vmatpush1.msra.mxu0 0.0
          %1177 = vmatprep.mubr.f32.mxu0 0.0
          %1178 = vmatmul.mubr.f32.gmra.mrb[0].mxu0 %v883
          %v1179 = vpop.f32.mrb[0].mxu0
          %v1180 = vadd.f32 %v1035, %v1179
          %v1181 = vpop.f32.mrb[0].mxu0
          %1182 = vmatprep.mubr.f32.mxu0 0.0
          %1183 = vmatmul.mubr.f32.gmra.mrb[0].mxu0 %v884
          %v1184 = vpop.f32.mrb[0].mxu0
          %v1185 = vadd.f32 %v1040, %v1184
          %v1186 = vpop.f32.mrb[0].mxu0
          %1187 = vmatprep.mubr.f32.mxu0 0.0
          %1188 = vmatmul.mubr.f32.gmra.mrb[0].mxu0 %v885
          %v1189 = vpop.f32.mrb[0].mxu0
          %v1190 = vadd.f32 %v1045, %v1189
          %v1191 = vpop.f32.mrb[0].mxu0
          %1192 = vmatprep.mubr.f32.mxu0 0.0
          %1193 = vmatmul.mubr.f32.gmra.mrb[0].mxu0 %v886
          %v1194 = vpop.f32.mrb[0].mxu0
          %v1195 = vadd.f32 %v1050, %v1194
          %v1196 = vpop.f32.mrb[0].mxu0
          %1197 = vmatprep.mubr.f32.mxu0 0.0
          %1198 = vmatmul.mubr.f32.gmra.mrb[0].mxu0 %v887
          %v1199 = vpop.f32.mrb[0].mxu0
          %v1200 = vadd.f32 %v1055, %v1199
          %v1201 = vpop.f32.mrb[0].mxu0
          %1202 = vmatprep.mubr.f32.mxu0 0.0
          %1203 = vmatmul.mubr.f32.gmra.mrb[0].mxu0 %v888
          %v1204 = vpop.f32.mrb[0].mxu0
          %v1205 = vadd.f32 %v1060, %v1204
          %v1206 = vpop.f32.mrb[0].mxu0
          %1207 = vmatprep.mubr.f32.mxu0 0.0
          %1208 = vmatmul.mubr.f32.gmra.mrb[0].mxu0 %v889
          %v1209 = vpop.f32.mrb[0].mxu0
          %v1210 = vadd.f32 %v1065, %v1209
          %v1211 = vpop.f32.mrb[0].mxu0
          %1212 = vmatprep.mubr.f32.mxu0 0.0
          %1213 = vmatmul.mubr.f32.gmra.mrb[0].mxu0 %v890
          %v1214 = vpop.f32.mrb[0].mxu0
          %v1215 = vadd.f32 %v1070, %v1214
          %v1216 = vpop.f32.mrb[0].mxu0
          %1217 = vmatprep.mubr.f32.mxu0 0.0
          %1218 = vmatmul.mubr.f32.gmra.mrb[0].mxu0 %v891
          %v1219 = vpop.f32.mrb[0].mxu0
          %v1220 = vadd.f32 %v1075, %v1219
          %v1221 = vpop.f32.mrb[0].mxu0
          %1222 = vmatprep.mubr.f32.mxu0 0.0
          %1223 = vmatmul.mubr.f32.gmra.mrb[0].mxu0 %v892
          %v1224 = vpop.f32.mrb[0].mxu0
          %v1225 = vadd.f32 %v1080, %v1224
          %v1226 = vpop.f32.mrb[0].mxu0
          %1227 = vmatprep.mubr.f32.mxu0 0.0
          %1228 = vmatmul.mubr.f32.gmra.mrb[0].mxu0 %v893
          %v1229 = vpop.f32.mrb[0].mxu0
          %v1230 = vadd.f32 %v1085, %v1229
          %v1231 = vpop.f32.mrb[0].mxu0
          %1232 = vmatprep.mubr.f32.mxu0 0.0
          %1233 = vmatmul.mubr.f32.gmra.mrb[0].mxu0 %v894
          %v1234 = vpop.f32.mrb[0].mxu0
          %v1235 = vadd.f32 %v1090, %v1234
          %v1236 = vpop.f32.mrb[0].mxu0
          %1237 = vmatprep.mubr.f32.mxu0 0.0
          %1238 = vmatmul.mubr.f32.gmra.mrb[0].mxu0 %v895
          %v1239 = vpop.f32.mrb[0].mxu0
          %v1240 = vadd.f32 %v1095, %v1239
          %v1241 = vpop.f32.mrb[0].mxu0
          %1242 = vmatprep.mubr.f32.mxu0 0.0
          %1243 = vmatmul.mubr.f32.gmra.mrb[0].mxu0 %v896
          %v1244 = vpop.f32.mrb[0].mxu0
          %v1245 = vadd.f32 %v1100, %v1244
          %v1246 = vpop.f32.mrb[0].mxu0
          %1247 = vmatprep.mubr.f32.mxu0 0.0
          %1248 = vmatmul.mubr.f32.gmra.mrb[0].mxu0 %v897
          %v1249 = vpop.f32.mrb[0].mxu0
          %v1250 = vadd.f32 %v1105, %v1249
          %v1251 = vpop.f32.mrb[0].mxu0
          %1252 = vmatprep.mubr.f32.mxu0 0.0
          %1253 = vmatmul.mubr.f32.gmra.mrb[0].mxu0 %v898
          %v1254 = vpop.f32.mrb[0].mxu0
          %v1255 = vadd.f32 %v1110, %v1254
          %v1256 = vpop.f32.mrb[0].mxu0
          %1257 = vdwg.mxu0
          %v1258 = vld [vmem:[%s4] sm:$0x1]
          %v1260 = vlaneseq
          %v1261 = vshrl.u32 %v1260, 7
          %v1262 = vsub.s32 0, %v1261
          %v1263 = vrot.slane %v1258, %v1262
          %v1265 = vadd.f32 %v1180, %v1263
          %v1266 = vadd.f32 %v1185, %v1263
          %v1267 = vadd.f32 %v1190, %v1263
          %v1268 = vadd.f32 %v1195, %v1263
          %v1269 = vadd.f32 %v1200, %v1263
          %v1270 = vadd.f32 %v1205, %v1263
          %v1271 = vadd.f32 %v1210, %v1263
          %v1272 = vadd.f32 %v1215, %v1263
          %v1273 = vadd.f32 %v1220, %v1263
          %v1274 = vadd.f32 %v1225, %v1263
          %v1275 = vadd.f32 %v1230, %v1263
          %v1276 = vadd.f32 %v1235, %v1263
          %v1277 = vadd.f32 %v1240, %v1263
          %v1278 = vadd.f32 %v1245, %v1263
          %v1279 = vadd.f32 %v1250, %v1263
          %v1280 = vadd.f32 %v1255, %v1263
          %1281 = vst [vmem:[%s338] sm:$0xff] %v1265
          %1282 = vst [vmem:[%s338 + $0x8] sm:$0xff] %v1266
          %1283 = vst [vmem:[%s338 + $0x10] sm:$0xff] %v1267
          %1284 = vst [vmem:[%s338 + $0x18] sm:$0xff] %v1268
          %1285 = vst [vmem:[%s338 + $0x20] sm:$0xff] %v1269
          %1286 = vst [vmem:[%s338 + $0x28] sm:$0xff] %v1270
          %1287 = vst [vmem:[%s338 + $0x30] sm:$0xff] %v1271
          %1288 = vst [vmem:[%s338 + $0x38] sm:$0xff] %v1272
          %1289 = vst [vmem:[%s338 + $0x40] sm:$0xff] %v1273
          %1290 = vst [vmem:[%s338 + $0x48] sm:$0xff] %v1274
          %1291 = vst [vmem:[%s338 + $0x50] sm:$0xff] %v1275
          %1292 = vst [vmem:[%s338 + $0x58] sm:$0xff] %v1276
          %1293 = vst [vmem:[%s338 + $0x60] sm:$0xff] %v1277
          %1294 = vst [vmem:[%s338 + $0x68] sm:$0xff] %v1278
          %1295 = vst [vmem:[%s338 + $0x70] sm:$0xff] %v1279
          %1296 = vst [vmem:[%s338 + $0x78] sm:$0xff] %v1280
        $region86: #{_emma_sage_impl.1} parent=73 // pred_fallthru
          _
        %s1297 = smul.u32 16, %s20
        %p1298 = scmp.lt.s32.totalorder %s1297, 63
        %s1299 = scalar_select %p1298, %s1297, 63
        %s1300 = smul.addr %s1299, 8
        %s1301 = scalar_lea.vmem %s5, %s1300
        // Predicated region
        $region87: #{_emma_sage_impl.1} parent=73 // pred_check
          %p1302 = pneg %p158
        $region88: #{_emma_sage_impl.1} parent=73 // pred_check_branch
          %1304 = sbr.rel (%p1302) target = $region90
        $region89: #{_emma_sage_impl.1} parent=73 // pred_region
          %s1305 = smul.u32 16, %s20
        $region90: #{_emma_sage_impl.1} parent=73 // pred_fallthru
          _
      $region74: #{_emma_sage_impl.1} parent=5 // pred_fallthru
        _
      %p1306 = scmp.le.s32.totalorder 2, %s11
      // Predicated region
      $region91: #{_emma_sage_impl.1} parent=5 // pred_check
        %p1307 = pneg %p1306
      $region92: #{_emma_sage_impl.1} parent=5 // pred_check_branch
        %1309 = sbr.rel (%p1307) target = $region94
      $region93: #{_emma_sage_impl.1} parent=5 // pred_region
        %s1310 = ssub.s32 %s11, 2
        // Predicated region
        $region95: #{_emma_sage_impl.1} parent=93 // pred_check
          %p1311 = pneg %p164
        $region96: #{_emma_sage_impl.1} parent=93 // pred_check_branch
          %1313 = sbr.rel (%p1311) target = $region98
        $region97: #{_emma_sage_impl.1} parent=93 // pred_region
          %s1314 = smul.u32 16, %s22
          %p1315 = scmp.lt.s32.totalorder %s1314, 63
          %s1316 = scalar_select %p1315, %s1314, 63
          %s1317 = smul.addr %s1316, 8
          %s1318 = scalar_lea.vmem %s5, %s1317
        $region98: #{_emma_sage_impl.1} parent=93 // pred_fallthru
          _
      $region94: #{_emma_sage_impl.1} parent=5 // pred_fallthru
        _
    $region6: #{_emma_sage_impl.1} parent=1 // loop_footer
      %s15 = sadd.s32 1, %s11
    $region7: #{_emma_sage_impl.1} parent=1 // loop_footer_branch
      %10 = sbr.rel target = $region3
    $region8: #{_emma_sage_impl.1} parent=1 // loop_exit
      _

</llo_original>
